<compile_context>
chip_gen: v7x
topology: tpu7x:2x2x1
jax: 0.10.0
libtpu: 0.0.40
codegen_flags: <defaults>
</compile_context>

<pallas_src>
import functools

import jax
import jax.numpy as jnp
from jax.experimental import pallas as pl
from jax.experimental.pallas import tpu as pltpu


def _lstm_kernel(x_flat_ref, x_last_ref,
                 wih_f_ref, whh_f_ref, b_f_ref,
                 wih_b_ref, whh_b_ref, b_b_ref,
                 wfc_ref, bfc_ref, out_ref, *, B, T, H):
    # Gate activation helper; gate order along lanes is PyTorch's [i, f, g, o].
    def gates_to_hc(gates, c_prev):
        i_g = jax.nn.sigmoid(gates[:, 0 * H:1 * H])
        f_g = jax.nn.sigmoid(gates[:, 1 * H:2 * H])
        g_g = jnp.tanh(gates[:, 2 * H:3 * H])
        o_g = jax.nn.sigmoid(gates[:, 3 * H:4 * H])
        # c_prev is None <=> zero initial state: f*c vanishes exactly.
        c_new = i_g * g_g if c_prev is None else f_g * c_prev + i_g * g_g
        return o_g * jnp.tanh(c_new), c_new

    # --- Hoisted forward-direction input projection, bias folded in:
    # one (B*T, D) @ (D, 4H) matmul instead of T serially-issued tiny matmuls.
    gx = (jnp.dot(x_flat_ref[...], wih_f_ref[...],
                  preferred_element_type=jnp.float32)
          + b_f_ref[...])                        # (B*T, 4H)
    gx = gx.reshape(B, T, 4 * H)                 # layout-preserving leading-dim split

    # --- Backward direction hidden at the last time index (zero initial state, so
    # only the input projection + activations are needed). Independent of the
    # forward recurrence, so the scheduler can hide it under the serial loop.
    gb = (jnp.dot(x_last_ref[...], wih_b_ref[...],
                  preferred_element_type=jnp.float32)
          + b_b_ref[...])                        # (B, 4H)
    h_bwd, _ = gates_to_hc(gb, None)

    # --- Forward recurrence, fully unrolled (T is a compile-time constant).
    # Per step: one (B,H)@(H,4H) matmul + elementwise state update.
    whh_f = whh_f_ref[...]
    h_fwd, c = gates_to_hc(gx[:, 0, :], None)    # step 0: h0 = c0 = 0
    for t in range(1, T):
        gates = gx[:, t, :] + jnp.dot(h_fwd, whh_f,
                                      preferred_element_type=jnp.float32)
        h_fwd, c = gates_to_hc(gates, c)

    # --- FC head without concatenation: static slices of the weight ref.
    out_ref[...] = (
        jnp.dot(h_fwd, wfc_ref[0:H, :], preferred_element_type=jnp.float32)
        + jnp.dot(h_bwd, wfc_ref[H:2 * H, :], preferred_element_type=jnp.float32)
        + bfc_ref[...])


def lstm_model_forward(x, params):
    """x: (B, T, D) float32, batch_first like PyTorch. Returns (B, output_dim)."""
    B, T, D = x.shape
    H = params["whh_f"].shape[0]
    O = params["wfc"].shape[1]

    # Free row-major views (no HBM transpose): flattened rows (row = b*T + t) for the
    # batched input projection, and the last time step for the backward direction.
    x_flat = x.reshape(B * T, D)
    x_last = x[:, T - 1, :]

    vmem = pl.BlockSpec(memory_space=pltpu.MemorySpace.VMEM)
    kernel = functools.partial(_lstm_kernel, B=B, T=T, H=H)
    out = pl.pallas_call(
        kernel,
        out_shape=jax.ShapeDtypeStruct((B, O), jnp.float32),
        in_specs=[vmem] * 10,
        out_specs=vmem,
    )(
        x_flat, x_last,
        params["wih_f"], params["whh_f"], params["b_f"],
        params["wih_b"], params["whh_b"], params["b_b"],
        params["wfc"], params["bfc"],
    )
    return out


def init_params(key, input_dim, hidden_dim, output_dim=1):
    """Deterministic init matching PyTorch shapes (weights stored pre-transposed)."""
    ks = jax.random.split(key, 10)
    s = 1.0 / jnp.sqrt(hidden_dim)

    def u(k, shape):
        return jax.random.uniform(k, shape, jnp.float32, -s, s)

    H, D, O = hidden_dim, input_dim, output_dim
    params = {
        # forward direction
        "wih_f": u(ks[0], (D, 4 * H)),          # transpose of PyTorch weight_ih_l0 (4H, D)
        "whh_f": u(ks[1], (H, 4 * H)),          # transpose of weight_hh_l0 (4H, H)
        "b_f":   u(ks[2], (1, 4 * H)) + u(ks[3], (1, 4 * H)),   # bias_ih + bias_hh
        # backward direction
        "wih_b": u(ks[4], (D, 4 * H)),
        "whh_b": u(ks[5], (H, 4 * H)),
        "b_b":   u(ks[6], (1, 4 * H)) + u(ks[7], (1, 4 * H)),
        # fc head
        "wfc":   u(ks[8], (2 * H, O)),
        "bfc":   u(ks[9], (1, O)),
    }
    return params


def _reference_forward(x, params):
    """Pure-JAX reference of the same semantics, for a sanity check."""
    B, T, D = x.shape
    H = params["whh_f"].shape[0]

    def step(x_t, h, c, wih, whh, b):
        g = x_t @ wih + h @ whh + b
        i = jax.nn.sigmoid(g[:, :H]); f = jax.nn.sigmoid(g[:, H:2 * H])
        gg = jnp.tanh(g[:, 2 * H:3 * H]); o = jax.nn.sigmoid(g[:, 3 * H:])
        c = f * c + i * gg
        return o * jnp.tanh(c), c

    h = jnp.zeros((B, H)); c = jnp.zeros((B, H))
    for t in range(T):
        h, c = step(x[:, t, :], h, c, params["wih_f"], params["whh_f"], params["b_f"])
    h_b, _ = step(x[:, -1, :], jnp.zeros((B, H)), jnp.zeros((B, H)),
                  params["wih_b"], params["whh_b"], params["b_b"])
    feat = jnp.concatenate([h, h_b], axis=-1)
    return feat @ params["wfc"] + params["bfc"]


if __name__ == "__main__":
    B, T, D, H, O = 2, 8, 16, 32, 1

    key = jax.random.PRNGKey(0)
    k_x, k_p = jax.random.split(key)
    x = jax.random.normal(k_x, (B, T, D), jnp.float32)
    params = init_params(k_p, D, H, O)

    y = lstm_model_forward(x, params)
    y = jax.block_until_ready(y)

    y_ref = _reference_forward(x, params)
    assert y.shape == (B, O)
    assert jnp.allclose(y, y_ref, atol=1e-5, rtol=1e-5), (y, y_ref)

    print("KERNEL_OK")
</pallas_src>

<mosaic_0001>
module attributes {stable_mosaic.version = 11 : i64} {
  func.func @_lstm_kernel(%arg0: memref<16x16xf32, #tpu.memory_space<vmem>>, %arg1: memref<2x16xf32, #tpu.memory_space<vmem>>, %arg2: memref<16x128xf32, #tpu.memory_space<vmem>>, %arg3: memref<32x128xf32, #tpu.memory_space<vmem>>, %arg4: memref<1x128xf32, #tpu.memory_space<vmem>>, %arg5: memref<16x128xf32, #tpu.memory_space<vmem>>, %arg6: memref<32x128xf32, #tpu.memory_space<vmem>>, %arg7: memref<1x128xf32, #tpu.memory_space<vmem>>, %arg8: memref<64x1xf32, #tpu.memory_space<vmem>>, %arg9: memref<1x1xf32, #tpu.memory_space<vmem>>, %arg10: memref<2x1xf32, #tpu.memory_space<vmem>>) attributes {dimension_semantics = [], scalar_prefetch = 0 : i64, scratch_operands = 0 : i64, tpu.core_type = #tpu.core_type<tc>} {
    %c0 = arith.constant 0 : index
    %c0_0 = arith.constant 0 : index
    %0 = vector.load %arg0[%c0, %c0_0] : memref<16x16xf32, #tpu.memory_space<vmem>>, vector<16x16xf32>
    %c0_1 = arith.constant 0 : index
    %c0_2 = arith.constant 0 : index
    %1 = vector.load %arg2[%c0_1, %c0_2] : memref<16x128xf32, #tpu.memory_space<vmem>>, vector<16x128xf32>
    %cst = arith.constant dense<0.000000e+00> : vector<16x128xf32>
    %2 = tpu.matmul %0, %1, %cst {dimension_numbers = #tpu.dot_dimension_numbers<[1], [0], [0], [1], [0, 0, 1, 1], [], []>} : vector<16x16xf32>, vector<16x128xf32>, vector<16x128xf32> -> vector<16x128xf32>
    %c0_3 = arith.constant 0 : index
    %c0_4 = arith.constant 0 : index
    %3 = vector.load %arg4[%c0_3, %c0_4] : memref<1x128xf32, #tpu.memory_space<vmem>>, vector<1x128xf32>
    %4 = vector.broadcast %3 : vector<1x128xf32> to vector<16x128xf32>
    %5 = arith.addf %2, %4 : vector<16x128xf32>
    %6 = vector.shape_cast %5 : vector<16x128xf32> to vector<2x8x128xf32>
    %c0_5 = arith.constant 0 : index
    %c0_6 = arith.constant 0 : index
    %7 = vector.load %arg1[%c0_5, %c0_6] : memref<2x16xf32, #tpu.memory_space<vmem>>, vector<2x16xf32>
    %c0_7 = arith.constant 0 : index
    %c0_8 = arith.constant 0 : index
    %8 = vector.load %arg5[%c0_7, %c0_8] : memref<16x128xf32, #tpu.memory_space<vmem>>, vector<16x128xf32>
    %cst_9 = arith.constant dense<0.000000e+00> : vector<2x128xf32>
    %9 = tpu.matmul %7, %8, %cst_9 {dimension_numbers = #tpu.dot_dimension_numbers<[1], [0], [0], [1], [0, 0, 1, 1], [], []>} : vector<2x16xf32>, vector<16x128xf32>, vector<2x128xf32> -> vector<2x128xf32>
    %c0_10 = arith.constant 0 : index
    %c0_11 = arith.constant 0 : index
    %10 = vector.load %arg7[%c0_10, %c0_11] : memref<1x128xf32, #tpu.memory_space<vmem>>, vector<1x128xf32>
    %11 = vector.broadcast %10 : vector<1x128xf32> to vector<2x128xf32>
    %12 = arith.addf %9, %11 : vector<2x128xf32>
    %13 = vector.extract_strided_slice %12 {offsets = [0, 0], sizes = [2, 32], strides = [1, 1]} : vector<2x128xf32> to vector<2x32xf32>
    %14 = arith.negf %13 : vector<2x32xf32>
    %15 = math.exp %14 : vector<2x32xf32>
    %cst_12 = arith.constant 1.000000e+00 : f32
    %16 = vector.broadcast %cst_12 : f32 to vector<2x32xf32>
    %17 = arith.addf %16, %15 : vector<2x32xf32>
    %18 = arith.divf %16, %17 : vector<2x32xf32>
    %19 = vector.extract_strided_slice %12 {offsets = [0, 64], sizes = [2, 32], strides = [1, 1]} : vector<2x128xf32> to vector<2x32xf32>
    %20 = math.tanh %19 : vector<2x32xf32>
    %21 = vector.extract_strided_slice %12 {offsets = [0, 96], sizes = [2, 32], strides = [1, 1]} : vector<2x128xf32> to vector<2x32xf32>
    %22 = arith.negf %21 : vector<2x32xf32>
    %23 = math.exp %22 : vector<2x32xf32>
    %cst_13 = arith.constant 1.000000e+00 : f32
    %24 = vector.broadcast %cst_13 : f32 to vector<2x32xf32>
    %25 = arith.addf %24, %23 : vector<2x32xf32>
    %26 = arith.divf %24, %25 : vector<2x32xf32>
    %27 = arith.mulf %18, %20 : vector<2x32xf32>
    %28 = math.tanh %27 : vector<2x32xf32>
    %29 = arith.mulf %26, %28 : vector<2x32xf32>
    %c0_14 = arith.constant 0 : index
    %c0_15 = arith.constant 0 : index
    %30 = vector.load %arg3[%c0_14, %c0_15] : memref<32x128xf32, #tpu.memory_space<vmem>>, vector<32x128xf32>
    %31 = vector.extract_strided_slice %6 {offsets = [0, 0, 0], sizes = [2, 1, 128], strides = [1, 1, 1]} : vector<2x8x128xf32> to vector<2x1x128xf32>
    %32 = vector.shape_cast %31 : vector<2x1x128xf32> to vector<2x128xf32>
    %33 = vector.extract_strided_slice %32 {offsets = [0, 0], sizes = [2, 32], strides = [1, 1]} : vector<2x128xf32> to vector<2x32xf32>
    %34 = arith.negf %33 : vector<2x32xf32>
    %35 = math.exp %34 : vector<2x32xf32>
    %cst_16 = arith.constant 1.000000e+00 : f32
    %36 = vector.broadcast %cst_16 : f32 to vector<2x32xf32>
    %37 = arith.addf %36, %35 : vector<2x32xf32>
    %38 = arith.divf %36, %37 : vector<2x32xf32>
    %39 = vector.extract_strided_slice %32 {offsets = [0, 64], sizes = [2, 32], strides = [1, 1]} : vector<2x128xf32> to vector<2x32xf32>
    %40 = math.tanh %39 : vector<2x32xf32>
    %41 = vector.extract_strided_slice %32 {offsets = [0, 96], sizes = [2, 32], strides = [1, 1]} : vector<2x128xf32> to vector<2x32xf32>
    %42 = arith.negf %41 : vector<2x32xf32>
    %43 = math.exp %42 : vector<2x32xf32>
    %cst_17 = arith.constant 1.000000e+00 : f32
    %44 = vector.broadcast %cst_17 : f32 to vector<2x32xf32>
    %45 = arith.addf %44, %43 : vector<2x32xf32>
    %46 = arith.divf %44, %45 : vector<2x32xf32>
    %47 = arith.mulf %38, %40 : vector<2x32xf32>
    %48 = math.tanh %47 : vector<2x32xf32>
    %49 = arith.mulf %46, %48 : vector<2x32xf32>
    %50 = vector.extract_strided_slice %6 {offsets = [0, 1, 0], sizes = [2, 1, 128], strides = [1, 1, 1]} : vector<2x8x128xf32> to vector<2x1x128xf32>
    %51 = vector.shape_cast %50 : vector<2x1x128xf32> to vector<2x128xf32>
    %cst_18 = arith.constant dense<0.000000e+00> : vector<2x128xf32>
    %52 = tpu.matmul %49, %30, %cst_18 {dimension_numbers = #tpu.dot_dimension_numbers<[1], [0], [0], [1], [0, 0, 1, 1], [], []>} : vector<2x32xf32>, vector<32x128xf32>, vector<2x128xf32> -> vector<2x128xf32>
    %53 = arith.addf %51, %52 : vector<2x128xf32>
    %54 = vector.extract_strided_slice %53 {offsets = [0, 0], sizes = [2, 32], strides = [1, 1]} : vector<2x128xf32> to vector<2x32xf32>
    %55 = arith.negf %54 : vector<2x32xf32>
    %56 = math.exp %55 : vector<2x32xf32>
    %cst_19 = arith.constant 1.000000e+00 : f32
    %57 = vector.broadcast %cst_19 : f32 to vector<2x32xf32>
    %58 = arith.addf %57, %56 : vector<2x32xf32>
    %59 = arith.divf %57, %58 : vector<2x32xf32>
    %60 = vector.extract_strided_slice %53 {offsets = [0, 32], sizes = [2, 32], strides = [1, 1]} : vector<2x128xf32> to vector<2x32xf32>
    %61 = arith.negf %60 : vector<2x32xf32>
    %62 = math.exp %61 : vector<2x32xf32>
    %cst_20 = arith.constant 1.000000e+00 : f32
    %63 = vector.broadcast %cst_20 : f32 to vector<2x32xf32>
    %64 = arith.addf %63, %62 : vector<2x32xf32>
    %65 = arith.divf %63, %64 : vector<2x32xf32>
    %66 = vector.extract_strided_slice %53 {offsets = [0, 64], sizes = [2, 32], strides = [1, 1]} : vector<2x128xf32> to vector<2x32xf32>
    %67 = math.tanh %66 : vector<2x32xf32>
    %68 = vector.extract_strided_slice %53 {offsets = [0, 96], sizes = [2, 32], strides = [1, 1]} : vector<2x128xf32> to vector<2x32xf32>
    %69 = arith.negf %68 : vector<2x32xf32>
    %70 = math.exp %69 : vector<2x32xf32>
    %cst_21 = arith.constant 1.000000e+00 : f32
    %71 = vector.broadcast %cst_21 : f32 to vector<2x32xf32>
    %72 = arith.addf %71, %70 : vector<2x32xf32>
    %73 = arith.divf %71, %72 : vector<2x32xf32>
    %74 = arith.mulf %65, %47 : vector<2x32xf32>
    %75 = arith.mulf %59, %67 : vector<2x32xf32>
    %76 = arith.addf %74, %75 : vector<2x32xf32>
    %77 = math.tanh %76 : vector<2x32xf32>
    %78 = arith.mulf %73, %77 : vector<2x32xf32>
    %79 = vector.extract_strided_slice %6 {offsets = [0, 2, 0], sizes = [2, 1, 128], strides = [1, 1, 1]} : vector<2x8x128xf32> to vector<2x1x128xf32>
    %80 = vector.shape_cast %79 : vector<2x1x128xf32> to vector<2x128xf32>
    %cst_22 = arith.constant dense<0.000000e+00> : vector<2x128xf32>
    %81 = tpu.matmul %78, %30, %cst_22 {dimension_numbers = #tpu.dot_dimension_numbers<[1], [0], [0], [1], [0, 0, 1, 1], [], []>} : vector<2x32xf32>, vector<32x128xf32>, vector<2x128xf32> -> vector<2x128xf32>
    %82 = arith.addf %80, %81 : vector<2x128xf32>
    %83 = vector.extract_strided_slice %82 {offsets = [0, 0], sizes = [2, 32], strides = [1, 1]} : vector<2x128xf32> to vector<2x32xf32>
    %84 = arith.negf %83 : vector<2x32xf32>
    %85 = math.exp %84 : vector<2x32xf32>
    %cst_23 = arith.constant 1.000000e+00 : f32
    %86 = vector.broadcast %cst_23 : f32 to vector<2x32xf32>
    %87 = arith.addf %86, %85 : vector<2x32xf32>
    %88 = arith.divf %86, %87 : vector<2x32xf32>
    %89 = vector.extract_strided_slice %82 {offsets = [0, 32], sizes = [2, 32], strides = [1, 1]} : vector<2x128xf32> to vector<2x32xf32>
    %90 = arith.negf %89 : vector<2x32xf32>
    %91 = math.exp %90 : vector<2x32xf32>
    %cst_24 = arith.constant 1.000000e+00 : f32
    %92 = vector.broadcast %cst_24 : f32 to vector<2x32xf32>
    %93 = arith.addf %92, %91 : vector<2x32xf32>
    %94 = arith.divf %92, %93 : vector<2x32xf32>
    %95 = vector.extract_strided_slice %82 {offsets = [0, 64], sizes = [2, 32], strides = [1, 1]} : vector<2x128xf32> to vector<2x32xf32>
    %96 = math.tanh %95 : vector<2x32xf32>
    %97 = vector.extract_strided_slice %82 {offsets = [0, 96], sizes = [2, 32], strides = [1, 1]} : vector<2x128xf32> to vector<2x32xf32>
    %98 = arith.negf %97 : vector<2x32xf32>
    %99 = math.exp %98 : vector<2x32xf32>
    %cst_25 = arith.constant 1.000000e+00 : f32
    %100 = vector.broadcast %cst_25 : f32 to vector<2x32xf32>
    %101 = arith.addf %100, %99 : vector<2x32xf32>
    %102 = arith.divf %100, %101 : vector<2x32xf32>
    %103 = arith.mulf %94, %76 : vector<2x32xf32>
    %104 = arith.mulf %88, %96 : vector<2x32xf32>
    %105 = arith.addf %103, %104 : vector<2x32xf32>
    %106 = math.tanh %105 : vector<2x32xf32>
    %107 = arith.mulf %102, %106 : vector<2x32xf32>
    %108 = vector.extract_strided_slice %6 {offsets = [0, 3, 0], sizes = [2, 1, 128], strides = [1, 1, 1]} : vector<2x8x128xf32> to vector<2x1x128xf32>
    %109 = vector.shape_cast %108 : vector<2x1x128xf32> to vector<2x128xf32>
    %cst_26 = arith.constant dense<0.000000e+00> : vector<2x128xf32>
    %110 = tpu.matmul %107, %30, %cst_26 {dimension_numbers = #tpu.dot_dimension_numbers<[1], [0], [0], [1], [0, 0, 1, 1], [], []>} : vector<2x32xf32>, vector<32x128xf32>, vector<2x128xf32> -> vector<2x128xf32>
    %111 = arith.addf %109, %110 : vector<2x128xf32>
    %112 = vector.extract_strided_slice %111 {offsets = [0, 0], sizes = [2, 32], strides = [1, 1]} : vector<2x128xf32> to vector<2x32xf32>
    %113 = arith.negf %112 : vector<2x32xf32>
    %114 = math.exp %113 : vector<2x32xf32>
    %cst_27 = arith.constant 1.000000e+00 : f32
    %115 = vector.broadcast %cst_27 : f32 to vector<2x32xf32>
    %116 = arith.addf %115, %114 : vector<2x32xf32>
    %117 = arith.divf %115, %116 : vector<2x32xf32>
    %118 = vector.extract_strided_slice %111 {offsets = [0, 32], sizes = [2, 32], strides = [1, 1]} : vector<2x128xf32> to vector<2x32xf32>
    %119 = arith.negf %118 : vector<2x32xf32>
    %120 = math.exp %119 : vector<2x32xf32>
    %cst_28 = arith.constant 1.000000e+00 : f32
    %121 = vector.broadcast %cst_28 : f32 to vector<2x32xf32>
    %122 = arith.addf %121, %120 : vector<2x32xf32>
    %123 = arith.divf %121, %122 : vector<2x32xf32>
    %124 = vector.extract_strided_slice %111 {offsets = [0, 64], sizes = [2, 32], strides = [1, 1]} : vector<2x128xf32> to vector<2x32xf32>
    %125 = math.tanh %124 : vector<2x32xf32>
    %126 = vector.extract_strided_slice %111 {offsets = [0, 96], sizes = [2, 32], strides = [1, 1]} : vector<2x128xf32> to vector<2x32xf32>
    %127 = arith.negf %126 : vector<2x32xf32>
    %128 = math.exp %127 : vector<2x32xf32>
    %cst_29 = arith.constant 1.000000e+00 : f32
    %129 = vector.broadcast %cst_29 : f32 to vector<2x32xf32>
    %130 = arith.addf %129, %128 : vector<2x32xf32>
    %131 = arith.divf %129, %130 : vector<2x32xf32>
    %132 = arith.mulf %123, %105 : vector<2x32xf32>
    %133 = arith.mulf %117, %125 : vector<2x32xf32>
    %134 = arith.addf %132, %133 : vector<2x32xf32>
    %135 = math.tanh %134 : vector<2x32xf32>
    %136 = arith.mulf %131, %135 : vector<2x32xf32>
    %137 = vector.extract_strided_slice %6 {offsets = [0, 4, 0], sizes = [2, 1, 128], strides = [1, 1, 1]} : vector<2x8x128xf32> to vector<2x1x128xf32>
    %138 = vector.shape_cast %137 : vector<2x1x128xf32> to vector<2x128xf32>
    %cst_30 = arith.constant dense<0.000000e+00> : vector<2x128xf32>
    %139 = tpu.matmul %136, %30, %cst_30 {dimension_numbers = #tpu.dot_dimension_numbers<[1], [0], [0], [1], [0, 0, 1, 1], [], []>} : vector<2x32xf32>, vector<32x128xf32>, vector<2x128xf32> -> vector<2x128xf32>
    %140 = arith.addf %138, %139 : vector<2x128xf32>
    %141 = vector.extract_strided_slice %140 {offsets = [0, 0], sizes = [2, 32], strides = [1, 1]} : vector<2x128xf32> to vector<2x32xf32>
    %142 = arith.negf %141 : vector<2x32xf32>
    %143 = math.exp %142 : vector<2x32xf32>
    %cst_31 = arith.constant 1.000000e+00 : f32
    %144 = vector.broadcast %cst_31 : f32 to vector<2x32xf32>
    %145 = arith.addf %144, %143 : vector<2x32xf32>
    %146 = arith.divf %144, %145 : vector<2x32xf32>
    %147 = vector.extract_strided_slice %140 {offsets = [0, 32], sizes = [2, 32], strides = [1, 1]} : vector<2x128xf32> to vector<2x32xf32>
    %148 = arith.negf %147 : vector<2x32xf32>
    %149 = math.exp %148 : vector<2x32xf32>
    %cst_32 = arith.constant 1.000000e+00 : f32
    %150 = vector.broadcast %cst_32 : f32 to vector<2x32xf32>
    %151 = arith.addf %150, %149 : vector<2x32xf32>
    %152 = arith.divf %150, %151 : vector<2x32xf32>
    %153 = vector.extract_strided_slice %140 {offsets = [0, 64], sizes = [2, 32], strides = [1, 1]} : vector<2x128xf32> to vector<2x32xf32>
    %154 = math.tanh %153 : vector<2x32xf32>
    %155 = vector.extract_strided_slice %140 {offsets = [0, 96], sizes = [2, 32], strides = [1, 1]} : vector<2x128xf32> to vector<2x32xf32>
    %156 = arith.negf %155 : vector<2x32xf32>
    %157 = math.exp %156 : vector<2x32xf32>
    %cst_33 = arith.constant 1.000000e+00 : f32
    %158 = vector.broadcast %cst_33 : f32 to vector<2x32xf32>
    %159 = arith.addf %158, %157 : vector<2x32xf32>
    %160 = arith.divf %158, %159 : vector<2x32xf32>
    %161 = arith.mulf %152, %134 : vector<2x32xf32>
    %162 = arith.mulf %146, %154 : vector<2x32xf32>
    %163 = arith.addf %161, %162 : vector<2x32xf32>
    %164 = math.tanh %163 : vector<2x32xf32>
    %165 = arith.mulf %160, %164 : vector<2x32xf32>
    %166 = vector.extract_strided_slice %6 {offsets = [0, 5, 0], sizes = [2, 1, 128], strides = [1, 1, 1]} : vector<2x8x128xf32> to vector<2x1x128xf32>
    %167 = vector.shape_cast %166 : vector<2x1x128xf32> to vector<2x128xf32>
    %cst_34 = arith.constant dense<0.000000e+00> : vector<2x128xf32>
    %168 = tpu.matmul %165, %30, %cst_34 {dimension_numbers = #tpu.dot_dimension_numbers<[1], [0], [0], [1], [0, 0, 1, 1], [], []>} : vector<2x32xf32>, vector<32x128xf32>, vector<2x128xf32> -> vector<2x128xf32>
    %169 = arith.addf %167, %168 : vector<2x128xf32>
    %170 = vector.extract_strided_slice %169 {offsets = [0, 0], sizes = [2, 32], strides = [1, 1]} : vector<2x128xf32> to vector<2x32xf32>
    %171 = arith.negf %170 : vector<2x32xf32>
    %172 = math.exp %171 : vector<2x32xf32>
    %cst_35 = arith.constant 1.000000e+00 : f32
    %173 = vector.broadcast %cst_35 : f32 to vector<2x32xf32>
    %174 = arith.addf %173, %172 : vector<2x32xf32>
    %175 = arith.divf %173, %174 : vector<2x32xf32>
    %176 = vector.extract_strided_slice %169 {offsets = [0, 32], sizes = [2, 32], strides = [1, 1]} : vector<2x128xf32> to vector<2x32xf32>
    %177 = arith.negf %176 : vector<2x32xf32>
    %178 = math.exp %177 : vector<2x32xf32>
    %cst_36 = arith.constant 1.000000e+00 : f32
    %179 = vector.broadcast %cst_36 : f32 to vector<2x32xf32>
    %180 = arith.addf %179, %178 : vector<2x32xf32>
    %181 = arith.divf %179, %180 : vector<2x32xf32>
    %182 = vector.extract_strided_slice %169 {offsets = [0, 64], sizes = [2, 32], strides = [1, 1]} : vector<2x128xf32> to vector<2x32xf32>
    %183 = math.tanh %182 : vector<2x32xf32>
    %184 = vector.extract_strided_slice %169 {offsets = [0, 96], sizes = [2, 32], strides = [1, 1]} : vector<2x128xf32> to vector<2x32xf32>
    %185 = arith.negf %184 : vector<2x32xf32>
    %186 = math.exp %185 : vector<2x32xf32>
    %cst_37 = arith.constant 1.000000e+00 : f32
    %187 = vector.broadcast %cst_37 : f32 to vector<2x32xf32>
    %188 = arith.addf %187, %186 : vector<2x32xf32>
    %189 = arith.divf %187, %188 : vector<2x32xf32>
    %190 = arith.mulf %181, %163 : vector<2x32xf32>
    %191 = arith.mulf %175, %183 : vector<2x32xf32>
    %192 = arith.addf %190, %191 : vector<2x32xf32>
    %193 = math.tanh %192 : vector<2x32xf32>
    %194 = arith.mulf %189, %193 : vector<2x32xf32>
    %195 = vector.extract_strided_slice %6 {offsets = [0, 6, 0], sizes = [2, 1, 128], strides = [1, 1, 1]} : vector<2x8x128xf32> to vector<2x1x128xf32>
    %196 = vector.shape_cast %195 : vector<2x1x128xf32> to vector<2x128xf32>
    %cst_38 = arith.constant dense<0.000000e+00> : vector<2x128xf32>
    %197 = tpu.matmul %194, %30, %cst_38 {dimension_numbers = #tpu.dot_dimension_numbers<[1], [0], [0], [1], [0, 0, 1, 1], [], []>} : vector<2x32xf32>, vector<32x128xf32>, vector<2x128xf32> -> vector<2x128xf32>
    %198 = arith.addf %196, %197 : vector<2x128xf32>
    %199 = vector.extract_strided_slice %198 {offsets = [0, 0], sizes = [2, 32], strides = [1, 1]} : vector<2x128xf32> to vector<2x32xf32>
    %200 = arith.negf %199 : vector<2x32xf32>
    %201 = math.exp %200 : vector<2x32xf32>
    %cst_39 = arith.constant 1.000000e+00 : f32
    %202 = vector.broadcast %cst_39 : f32 to vector<2x32xf32>
    %203 = arith.addf %202, %201 : vector<2x32xf32>
    %204 = arith.divf %202, %203 : vector<2x32xf32>
    %205 = vector.extract_strided_slice %198 {offsets = [0, 32], sizes = [2, 32], strides = [1, 1]} : vector<2x128xf32> to vector<2x32xf32>
    %206 = arith.negf %205 : vector<2x32xf32>
    %207 = math.exp %206 : vector<2x32xf32>
    %cst_40 = arith.constant 1.000000e+00 : f32
    %208 = vector.broadcast %cst_40 : f32 to vector<2x32xf32>
    %209 = arith.addf %208, %207 : vector<2x32xf32>
    %210 = arith.divf %208, %209 : vector<2x32xf32>
    %211 = vector.extract_strided_slice %198 {offsets = [0, 64], sizes = [2, 32], strides = [1, 1]} : vector<2x128xf32> to vector<2x32xf32>
    %212 = math.tanh %211 : vector<2x32xf32>
    %213 = vector.extract_strided_slice %198 {offsets = [0, 96], sizes = [2, 32], strides = [1, 1]} : vector<2x128xf32> to vector<2x32xf32>
    %214 = arith.negf %213 : vector<2x32xf32>
    %215 = math.exp %214 : vector<2x32xf32>
    %cst_41 = arith.constant 1.000000e+00 : f32
    %216 = vector.broadcast %cst_41 : f32 to vector<2x32xf32>
    %217 = arith.addf %216, %215 : vector<2x32xf32>
    %218 = arith.divf %216, %217 : vector<2x32xf32>
    %219 = arith.mulf %210, %192 : vector<2x32xf32>
    %220 = arith.mulf %204, %212 : vector<2x32xf32>
    %221 = arith.addf %219, %220 : vector<2x32xf32>
    %222 = math.tanh %221 : vector<2x32xf32>
    %223 = arith.mulf %218, %222 : vector<2x32xf32>
    %224 = vector.extract_strided_slice %6 {offsets = [0, 7, 0], sizes = [2, 1, 128], strides = [1, 1, 1]} : vector<2x8x128xf32> to vector<2x1x128xf32>
    %225 = vector.shape_cast %224 : vector<2x1x128xf32> to vector<2x128xf32>
    %cst_42 = arith.constant dense<0.000000e+00> : vector<2x128xf32>
    %226 = tpu.matmul %223, %30, %cst_42 {dimension_numbers = #tpu.dot_dimension_numbers<[1], [0], [0], [1], [0, 0, 1, 1], [], []>} : vector<2x32xf32>, vector<32x128xf32>, vector<2x128xf32> -> vector<2x128xf32>
    %227 = arith.addf %225, %226 : vector<2x128xf32>
    %228 = vector.extract_strided_slice %227 {offsets = [0, 0], sizes = [2, 32], strides = [1, 1]} : vector<2x128xf32> to vector<2x32xf32>
    %229 = arith.negf %228 : vector<2x32xf32>
    %230 = math.exp %229 : vector<2x32xf32>
    %cst_43 = arith.constant 1.000000e+00 : f32
    %231 = vector.broadcast %cst_43 : f32 to vector<2x32xf32>
    %232 = arith.addf %231, %230 : vector<2x32xf32>
    %233 = arith.divf %231, %232 : vector<2x32xf32>
    %234 = vector.extract_strided_slice %227 {offsets = [0, 32], sizes = [2, 32], strides = [1, 1]} : vector<2x128xf32> to vector<2x32xf32>
    %235 = arith.negf %234 : vector<2x32xf32>
    %236 = math.exp %235 : vector<2x32xf32>
    %cst_44 = arith.constant 1.000000e+00 : f32
    %237 = vector.broadcast %cst_44 : f32 to vector<2x32xf32>
    %238 = arith.addf %237, %236 : vector<2x32xf32>
    %239 = arith.divf %237, %238 : vector<2x32xf32>
    %240 = vector.extract_strided_slice %227 {offsets = [0, 64], sizes = [2, 32], strides = [1, 1]} : vector<2x128xf32> to vector<2x32xf32>
    %241 = math.tanh %240 : vector<2x32xf32>
    %242 = vector.extract_strided_slice %227 {offsets = [0, 96], sizes = [2, 32], strides = [1, 1]} : vector<2x128xf32> to vector<2x32xf32>
    %243 = arith.negf %242 : vector<2x32xf32>
    %244 = math.exp %243 : vector<2x32xf32>
    %cst_45 = arith.constant 1.000000e+00 : f32
    %245 = vector.broadcast %cst_45 : f32 to vector<2x32xf32>
    %246 = arith.addf %245, %244 : vector<2x32xf32>
    %247 = arith.divf %245, %246 : vector<2x32xf32>
    %248 = arith.mulf %239, %221 : vector<2x32xf32>
    %249 = arith.mulf %233, %241 : vector<2x32xf32>
    %250 = arith.addf %248, %249 : vector<2x32xf32>
    %251 = math.tanh %250 : vector<2x32xf32>
    %252 = arith.mulf %247, %251 : vector<2x32xf32>
    %c0_46 = arith.constant 0 : index
    %c0_47 = arith.constant 0 : index
    %253 = vector.load %arg8[%c0_46, %c0_47] : memref<64x1xf32, #tpu.memory_space<vmem>>, vector<32x1xf32>
    %cst_48 = arith.constant dense<0.000000e+00> : vector<2x1xf32>
    %254 = tpu.matmul %252, %253, %cst_48 {dimension_numbers = #tpu.dot_dimension_numbers<[1], [0], [0], [1], [0, 0, 1, 1], [], []>} : vector<2x32xf32>, vector<32x1xf32>, vector<2x1xf32> -> vector<2x1xf32>
    %c32 = arith.constant 32 : index
    %c0_49 = arith.constant 0 : index
    %255 = vector.load %arg8[%c32, %c0_49] : memref<64x1xf32, #tpu.memory_space<vmem>>, vector<32x1xf32>
    %cst_50 = arith.constant dense<0.000000e+00> : vector<2x1xf32>
    %256 = tpu.matmul %29, %255, %cst_50 {dimension_numbers = #tpu.dot_dimension_numbers<[1], [0], [0], [1], [0, 0, 1, 1], [], []>} : vector<2x32xf32>, vector<32x1xf32>, vector<2x1xf32> -> vector<2x1xf32>
    %257 = arith.addf %254, %256 : vector<2x1xf32>
    %c0_51 = arith.constant 0 : index
    %c0_52 = arith.constant 0 : index
    %258 = vector.load %arg9[%c0_51, %c0_52] : memref<1x1xf32, #tpu.memory_space<vmem>>, vector<1x1xf32>
    %259 = vector.broadcast %258 : vector<1x1xf32> to vector<2x1xf32>
    %260 = arith.addf %257, %259 : vector<2x1xf32>
    %c0_53 = arith.constant 0 : index
    %c0_54 = arith.constant 0 : index
    %261 = vector.load %arg10[%c0_53, %c0_54] : memref<2x1xf32, #tpu.memory_space<vmem>>, vector<2x1xf32>
    tpu.vector_store %arg10[%c0_53, %c0_54], %260 {strides = array<i32>} : memref<2x1xf32, #tpu.memory_space<vmem>>, vector<2x1xf32>,
    return
  }
}

</mosaic_0001>

<llo_original>
// kernel: tpu_custom_call.1
$region0: #{tpu_custom_call.1}
  #allocation0 [shape = 'u32[]', space=smem, size = 0x4, offset = 0x4, fixed_abs, tag = 'smem constant byte address 0x4 - core index']
  #allocation1 [shape = 'u32[144,128]{1,0:T(1,128)}', space=vmem, size = 0x12000, scoped, tag = 'internal scratch']
  #allocation2 [shape = 'f32[1,1]{1,0:T(1,128)S(1)}', space=vmem, size = 0x200, scoped, tag = 'scoped memory for tpu_custom_call.1']
  %s0 = inlined_call_operand.hbm [shape: f32[16,16], index: 0, kind: input, shape index: {}]
  %s1 = inlined_call_operand.hbm [shape: f32[2,16], index: 1, kind: input, shape index: {}]
  %s2 = inlined_call_operand.hbm [shape: f32[16,128], index: 2, kind: input, shape index: {}]
  %s3 = inlined_call_operand.vmem [shape: f32[32,128], index: 3, kind: input, shape index: {}]
  %s4 = inlined_call_operand.vmem [shape: f32[1,128], index: 4, kind: input, shape index: {}]
  %s5 = inlined_call_operand.vmem [shape: f32[16,128], index: 5, kind: input, shape index: {}]
  %s6 = inlined_call_operand.vmem [shape: f32[32,128], index: 6, kind: input, shape index: {}]
  %s7 = inlined_call_operand.vmem [shape: f32[1,128], index: 7, kind: input, shape index: {}]
  %s8 = inlined_call_operand.vmem [shape: f32[64,1], index: 8, kind: input, shape index: {}]
  %s9 = inlined_call_operand.<no memory space> [shape: f32[1,1], index: 9, kind: input, shape index: {}]
  %s10 = inlined_call_operand.vmem [shape: f32[2,1], index: 10, kind: output, shape index: {}]
  %s11 = sld [smem:[#allocation0]]
  $region62: #{tpu_custom_call.1} parent=0
    _
  %s13 = ssub.s32 1, %s11
  %s14 = scalar_select 0, %s13, %s11
  %v15 = vstv %s9
  %16 = vst [vmem:[#allocation2] sm:$0x1] %v15
  $region1: #{tpu_custom_call.1} parent=0
    #allocation3 [shape = 'u8[8192]{0}', space=vmem, size = 0x2000, scoped, tag = 'input window, operand 0, single buffered']
    #allocation4 [shape = 's32[1]{0}', space=sflag, size = 0x4, scoped, tag = 'scoped memory for tpu_custom_call.1']
    #allocation5 [shape = 'u8[1024]{0}', space=vmem, size = 0x400, scoped, tag = 'input window, operand 1, single buffered']
    #allocation6 [shape = 's32[1]{0}', space=sflag, size = 0x4, scoped, tag = 'scoped memory for tpu_custom_call.1']
    #allocation7 [shape = 'u8[8192]{0}', space=vmem, size = 0x2000, scoped, tag = 'input window, operand 2, single buffered']
    %17 = vsyncpa [#allocation4], 0
    %18 = vsyncpa [#allocation6], 0
    // Predicated region
    $region2: #{tpu_custom_call.1} parent=1 // pred_check
      _
    $region3: #{tpu_custom_call.1} parent=1 // pred_check_branch
      %20 = sbr.rel (0) target = $region5
    $region4: #{tpu_custom_call.1} parent=1 // pred_region
      %s22 = ssub.s32 256, 256
      %23 = vsyncadd [#allocation4], %s22
      %s24 = sshll.u32 [#allocation3], 4
      %s25 = int_to_ptr.vmem [resolvable:$true] %s24
      %30 = dma.hbm_to_vmem [thread:$0]  %s0, 256, %s25, [#allocation4], 128, 128, 8
    $region5: #{tpu_custom_call.1} parent=1 // pred_fallthru
      _
    // Predicated region
    $region6: #{tpu_custom_call.1} parent=1 // pred_check
      _
    $region7: #{tpu_custom_call.1} parent=1 // pred_check_branch
      %32 = sbr.rel (0) target = $region9
    $region8: #{tpu_custom_call.1} parent=1 // pred_region
      %s34 = ssub.s32 32, 32
      %35 = vsyncadd [#allocation6], %s34
      %s37 = sshll.u32 [#allocation5], 4
      %s38 = int_to_ptr.vmem [resolvable:$true] %s37
      %40 = dma.hbm_to_vmem [thread:$0]  %s1, 32, %s38, [#allocation6]
    $region9: #{tpu_custom_call.1} parent=1 // pred_fallthru
      _
    // Predicated region
    $region10: #{tpu_custom_call.1} parent=1 // pred_check
      _
    $region11: #{tpu_custom_call.1} parent=1 // pred_check_branch
      %42 = sbr.rel (0) target = $region13
    $region12: #{tpu_custom_call.1} parent=1 // pred_region
      %s44 = ssub.s32 256, 256
      %45 = vsyncadd [#allocation6], %s44
      %s46 = sshll.u32 [#allocation7], 4
      %s47 = int_to_ptr.vmem [resolvable:$true] %s46
      %52 = dma.hbm_to_vmem [thread:$0]  %s2, 256, %s47, [#allocation6], 128, 128, 8
    $region13: #{tpu_custom_call.1} parent=1 // pred_fallthru
      _
    // Predicated region
    $region14: #{tpu_custom_call.1} parent=1 // pred_check
      _
    $region15: #{tpu_custom_call.1} parent=1 // pred_check_branch
      %54 = sbr.rel (0) target = $region17
    $region16: #{tpu_custom_call.1} parent=1 // pred_region
      _
    $region17: #{tpu_custom_call.1} parent=1 // pred_fallthru
      _
    // Predicated region
    $region18: #{tpu_custom_call.1} parent=1 // pred_check
      _
    $region19: #{tpu_custom_call.1} parent=1 // pred_check_branch
      %56 = sbr.rel (0) target = $region21
    $region20: #{tpu_custom_call.1} parent=1 // pred_region
      _
    $region21: #{tpu_custom_call.1} parent=1 // pred_fallthru
      _
    // Predicated region
    $region22: #{tpu_custom_call.1} parent=1 // pred_check
      _
    $region23: #{tpu_custom_call.1} parent=1 // pred_check_branch
      %58 = sbr.rel (0) target = $region25
    $region24: #{tpu_custom_call.1} parent=1 // pred_region
      _
    $region25: #{tpu_custom_call.1} parent=1 // pred_fallthru
      _
    // Predicated region
    $region26: #{tpu_custom_call.1} parent=1 // pred_check
      _
    $region27: #{tpu_custom_call.1} parent=1 // pred_check_branch
      %60 = sbr.rel (0) target = $region29
    $region28: #{tpu_custom_call.1} parent=1 // pred_region
      _
    $region29: #{tpu_custom_call.1} parent=1 // pred_fallthru
      _
    // Predicated region
    $region30: #{tpu_custom_call.1} parent=1 // pred_check
      _
    $region31: #{tpu_custom_call.1} parent=1 // pred_check_branch
      %62 = sbr.rel (0) target = $region33
    $region32: #{tpu_custom_call.1} parent=1 // pred_region
      _
    $region33: #{tpu_custom_call.1} parent=1 // pred_fallthru
      _
    // Predicated region
    $region34: #{tpu_custom_call.1} parent=1 // pred_check
      _
    $region35: #{tpu_custom_call.1} parent=1 // pred_check_branch
      %64 = sbr.rel (0) target = $region37
    $region36: #{tpu_custom_call.1} parent=1 // pred_region
      _
    $region37: #{tpu_custom_call.1} parent=1 // pred_fallthru
      _
    // Predicated region
    $region38: #{tpu_custom_call.1} parent=1 // pred_check
      _
    $region39: #{tpu_custom_call.1} parent=1 // pred_check_branch
      %66 = sbr.rel (0) target = $region41
    $region40: #{tpu_custom_call.1} parent=1 // pred_region
      _
    $region41: #{tpu_custom_call.1} parent=1 // pred_fallthru
      _
    // Predicated region
    $region42: #{tpu_custom_call.1} parent=1 // pred_check
      _
    $region43: #{tpu_custom_call.1} parent=1 // pred_check_branch
      %68 = sbr.rel (0) target = $region45
    $region44: #{tpu_custom_call.1} parent=1 // pred_region
      %69 = dma.done [#allocation4], 256
    $region45: #{tpu_custom_call.1} parent=1 // pred_fallthru
      _
    // Predicated region
    $region46: #{tpu_custom_call.1} parent=1 // pred_check
      _
    $region47: #{tpu_custom_call.1} parent=1 // pred_check_branch
      %71 = sbr.rel (0) target = $region49
    $region48: #{tpu_custom_call.1} parent=1 // pred_region
      %72 = dma.done [#allocation6], 32
    $region49: #{tpu_custom_call.1} parent=1 // pred_fallthru
      _
    // Predicated region
    $region50: #{tpu_custom_call.1} parent=1 // pred_check
      _
    $region51: #{tpu_custom_call.1} parent=1 // pred_check_branch
      %74 = sbr.rel (0) target = $region53
    $region52: #{tpu_custom_call.1} parent=1 // pred_region
      %75 = dma.done [#allocation6], 256
    $region53: #{tpu_custom_call.1} parent=1 // pred_fallthru
      _
    %v76 = vld [vmem:[#allocation3] sm:$0xff]
    %v77 = vld [vmem:[#allocation3 + $0x8] sm:$0xff]
    %v78 = vld [vmem:[#allocation7] sm:$0xff]
    %v79 = vld [vmem:[#allocation7 + $0x8] sm:$0xff]
    %v80 = vld [vmem:[%s4] sm:$0x1]
    %v82 = vlaneseq
    %v83 = vshrl.u32 %v82, 7
    %v84 = vsub.s32 0, %v83
    %v85 = vrot.slane %v80, %v84
    %vm87 = vcmask 130048
    %v89 = vsel %vm87, %v76, 0
    %v92 = vsel %vm87, %v77, 0
    %94 = vmatprep.subr.mxu0 0.0
    %95 = vmatpush1.msra.mxu0 %v78
    %96 = vmatprep.subr.mxu0 0.0
    %97 = vmatpush1.msra.mxu0 %v79
    %98 = vmatprep.subr.mxu0 0.0
    %99 = vmatpush1.msra.mxu0 0.0
    %100 = vmatprep.subr.mxu0 0.0
    %101 = vmatpush1.msra.mxu0 0.0
    %102 = vmatprep.subr.mxu0 0.0
    %103 = vmatpush1.msra.mxu0 0.0
    %104 = vmatprep.subr.mxu0 0.0
    %105 = vmatpush1.msra.mxu0 0.0
    %106 = vmatprep.subr.mxu0 0.0
    %107 = vmatpush1.msra.mxu0 0.0
    %108 = vmatprep.subr.mxu0 0.0
    %109 = vmatpush1.msra.mxu0 0.0
    %110 = vmatprep.subr.mxu0 0.0
    %111 = vmatpush1.msra.mxu0 0.0
    %112 = vmatprep.subr.mxu0 0.0
    %113 = vmatpush1.msra.mxu0 0.0
    %114 = vmatprep.subr.mxu0 0.0
    %115 = vmatpush1.msra.mxu0 0.0
    %116 = vmatprep.subr.mxu0 0.0
    %117 = vmatpush1.msra.mxu0 0.0
    %118 = vmatprep.subr.mxu0 0.0
    %119 = vmatpush1.msra.mxu0 0.0
    %120 = vmatprep.subr.mxu0 0.0
    %121 = vmatpush1.msra.mxu0 0.0
    %122 = vmatprep.subr.mxu0 0.0
    %123 = vmatpush1.msra.mxu0 0.0
    %124 = vmatprep.subr.mxu0 0.0
    %125 = vmatpush1.msra.mxu0 0.0
    %126 = vmatprep.subr.mxu0 0.0
    %127 = vmatpush1.msra.mxu0 0.0
    %128 = vmatprep.subr.mxu0 0.0
    %129 = vmatpush1.msra.mxu0 0.0
    %130 = vmatprep.subr.mxu0 0.0
    %131 = vmatpush1.msra.mxu0 0.0
    %132 = vmatprep.subr.mxu0 0.0
    %133 = vmatpush1.msra.mxu0 0.0
    %134 = vmatprep.subr.mxu0 0.0
    %135 = vmatpush1.msra.mxu0 0.0
    %136 = vmatprep.subr.mxu0 0.0
    %137 = vmatpush1.msra.mxu0 0.0
    %138 = vmatprep.subr.mxu0 0.0
    %139 = vmatpush1.msra.mxu0 0.0
    %140 = vmatprep.subr.mxu0 0.0
    %141 = vmatpush1.msra.mxu0 0.0
    %142 = vmatprep.subr.mxu0 0.0
    %143 = vmatpush1.msra.mxu0 0.0
    %144 = vmatprep.subr.mxu0 0.0
    %145 = vmatpush1.msra.mxu0 0.0
    %146 = vmatprep.subr.mxu0 0.0
    %147 = vmatpush1.msra.mxu0 0.0
    %148 = vmatprep.subr.mxu0 0.0
    %149 = vmatpush1.msra.mxu0 0.0
    %150 = vmatprep.subr.mxu0 0.0
    %151 = vmatpush1.msra.mxu0 0.0
    %152 = vmatprep.subr.mxu0 0.0
    %153 = vmatpush1.msra.mxu0 0.0
    %154 = vmatprep.subr.mxu0 0.0
    %155 = vmatpush1.msra.mxu0 0.0
    %156 = vmatprep.subr.mxu0 0.0
    %157 = vmatpush1.msra.mxu0 0.0
    %158 = vmatprep.mubr.f32.mxu0 0.0
    %159 = vmatmul.mubr.f32.gmra.mrb[0].mxu0 %v89
    %v160 = vpop.f32.mrb[0].mxu0
    %v161 = vadd.f32 %v85, %v160
    %v162 = vpop.f32.mrb[0].mxu0
    %163 = vmatprep.mubr.f32.mxu0 0.0
    %164 = vmatmul.mubr.f32.gmra.mrb[0].mxu0 %v92
    %v165 = vpop.f32.mrb[0].mxu0
    %v166 = vadd.f32 %v85, %v165
    %v167 = vpop.f32.mrb[0].mxu0
    %168 = vdwg.mxu0
    %v169 = vld [vmem:[#allocation5] sm:$0x3]
    %v170 = vld [vmem:[%s5] sm:$0xff]
    %v171 = vld [vmem:[%s5 + $0x8] sm:$0xff]
    %v172 = vld [vmem:[%s7] sm:$0x1]
    %v174 = vlaneseq
    %v175 = vshrl.u32 %v174, 7
    %v176 = vsub.s32 0, %v175
    %v177 = vrot.slane %v172, %v176
    %v180 = vsel %vm87, %v169, 0
    %182 = vmatprep.subr.mxu0 0.0
    %183 = vmatpush1.msra.mxu0 %v170
    %184 = vmatprep.subr.mxu0 0.0
    %185 = vmatpush1.msra.mxu0 %v171
    %186 = vmatprep.subr.mxu0 0.0
    %187 = vmatpush1.msra.mxu0 0.0
    %188 = vmatprep.subr.mxu0 0.0
    %189 = vmatpush1.msra.mxu0 0.0
    %190 = vmatprep.subr.mxu0 0.0
    %191 = vmatpush1.msra.mxu0 0.0
    %192 = vmatprep.subr.mxu0 0.0
    %193 = vmatpush1.msra.mxu0 0.0
    %194 = vmatprep.subr.mxu0 0.0
    %195 = vmatpush1.msra.mxu0 0.0
    %196 = vmatprep.subr.mxu0 0.0
    %197 = vmatpush1.msra.mxu0 0.0
    %198 = vmatprep.subr.mxu0 0.0
    %199 = vmatpush1.msra.mxu0 0.0
    %200 = vmatprep.subr.mxu0 0.0
    %201 = vmatpush1.msra.mxu0 0.0
    %202 = vmatprep.subr.mxu0 0.0
    %203 = vmatpush1.msra.mxu0 0.0
    %204 = vmatprep.subr.mxu0 0.0
    %205 = vmatpush1.msra.mxu0 0.0
    %206 = vmatprep.subr.mxu0 0.0
    %207 = vmatpush1.msra.mxu0 0.0
    %208 = vmatprep.subr.mxu0 0.0
    %209 = vmatpush1.msra.mxu0 0.0
    %210 = vmatprep.subr.mxu0 0.0
    %211 = vmatpush1.msra.mxu0 0.0
    %212 = vmatprep.subr.mxu0 0.0
    %213 = vmatpush1.msra.mxu0 0.0
    %214 = vmatprep.subr.mxu0 0.0
    %215 = vmatpush1.msra.mxu0 0.0
    %216 = vmatprep.subr.mxu0 0.0
    %217 = vmatpush1.msra.mxu0 0.0
    %218 = vmatprep.subr.mxu0 0.0
    %219 = vmatpush1.msra.mxu0 0.0
    %220 = vmatprep.subr.mxu0 0.0
    %221 = vmatpush1.msra.mxu0 0.0
    %222 = vmatprep.subr.mxu0 0.0
    %223 = vmatpush1.msra.mxu0 0.0
    %224 = vmatprep.subr.mxu0 0.0
    %225 = vmatpush1.msra.mxu0 0.0
    %226 = vmatprep.subr.mxu0 0.0
    %227 = vmatpush1.msra.mxu0 0.0
    %228 = vmatprep.subr.mxu0 0.0
    %229 = vmatpush1.msra.mxu0 0.0
    %230 = vmatprep.subr.mxu0 0.0
    %231 = vmatpush1.msra.mxu0 0.0
    %232 = vmatprep.subr.mxu0 0.0
    %233 = vmatpush1.msra.mxu0 0.0
    %234 = vmatprep.subr.mxu0 0.0
    %235 = vmatpush1.msra.mxu0 0.0
    %236 = vmatprep.subr.mxu0 0.0
    %237 = vmatpush1.msra.mxu0 0.0
    %238 = vmatprep.subr.mxu0 0.0
    %239 = vmatpush1.msra.mxu0 0.0
    %240 = vmatprep.subr.mxu0 0.0
    %241 = vmatpush1.msra.mxu0 0.0
    %242 = vmatprep.subr.mxu0 0.0
    %243 = vmatpush1.msra.mxu0 0.0
    %244 = vmatprep.subr.mxu0 0.0
    %245 = vmatpush1.msra.mxu0 0.0
    %246 = vmatprep.mubr.f32.mxu0 0.0
    %247 = vmatmul.mubr.f32.gmra.mrb[0].mxu0 %v180
    %v248 = vpop.f32.mrb[0].mxu0
    %v249 = vadd.f32 %v177, %v248
    %v250 = vpop.f32.mrb[0].mxu0
    %251 = vdwg.mxu0
    %v252 = vxor.u32 %v249, 2147483648
    %v253 = vmul.f32 %v252, 1.442695
    %v254 = vpow.pop %v253
    %v255 = vadd.f32 %v254, 1.0
    %v256 = vrcp.pop %v255
    %v257 = vmul.f32 1.0, %v256
    %v258 = vtanh.pop %v249
    %260 = vrot.lane.b32.xlu0 %v258, 64
    %v261 = vpop.permute.xlu0 %260
    %v263 = vmul.f32 %v257, %v261
    %v264 = vtanh.pop %v263
    %266 = vrot.lane.b32.xlu0 %v264, 96
    %v267 = vpop.permute.xlu0 %266
    %v269 = vmul.f32 %v257, %v267
    %v270 = vld [vmem:[%s3] sm:$0xff]
    %v271 = vld [vmem:[%s3 + $0x8] sm:$0xff]
    %v272 = vld [vmem:[%s3 + $0x10] sm:$0xff]
    %v273 = vld [vmem:[%s3 + $0x18] sm:$0xff]
    %v274 = vxor.u32 %v161, 2147483648
    %v275 = vxor.u32 %v166, 2147483648
    %v276 = vmul.f32 %v274, 1.442695
    %v277 = vpow.pop %v276
    %v278 = vmul.f32 %v275, 1.442695
    %v279 = vpow.pop %v278
    %v280 = vadd.f32 %v277, 1.0
    %v281 = vadd.f32 %v279, 1.0
    %v282 = vrcp.pop %v280
    %v283 = vmul.f32 1.0, %v282
    %v284 = vrcp.pop %v281
    %v285 = vmul.f32 1.0, %v284
    %v286 = vtanh.pop %v161
    %v287 = vtanh.pop %v166
    %290 = vrot.lane.b32.xlu0 %v286, 64
    %v291 = vpop.permute.xlu0 %290
    %292 = vrot.lane.b32.xlu0 %v287, 64
    %v293 = vpop.permute.xlu0 %292
    %v296 = vmul.f32 %v283, %v291
    %v297 = vmul.f32 %v285, %v293
    %v298 = vtanh.pop %v296
    %v299 = vtanh.pop %v297
    %302 = vrot.lane.b32.xlu0 %v298, 96
    %v303 = vpop.permute.xlu0 %302
    %304 = vrot.lane.b32.xlu0 %v299, 96
    %v305 = vpop.permute.xlu0 %304
    %v308 = vmul.f32 %v283, %v303
    %v309 = vmul.f32 %v285, %v305
    %v312 = vrot.slane %v309, 7
    %vm313 = vcmask 1041409
    %v314 = vsel %vm313, %v312, %v308
    %315 = vrot.lane.b32.xlu0 %v314, 32
    %v316 = vpop.permute.xlu0 %315
    %vm317 = vcmask 261120
    %v318 = vsel %vm317, %v316, 0
    %320 = vmatprep.subr.mxu0 0.0
    %321 = vmatpush1.msra.mxu0 %v270
    %322 = vmatprep.subr.mxu0 0.0
    %323 = vmatpush1.msra.mxu0 %v271
    %324 = vmatprep.subr.mxu0 0.0
    %325 = vmatpush1.msra.mxu0 %v272
    %326 = vmatprep.subr.mxu0 0.0
    %327 = vmatpush1.msra.mxu0 %v273
    %328 = vmatprep.subr.mxu0 0.0
    %329 = vmatpush1.msra.mxu0 0.0
    %330 = vmatprep.subr.mxu0 0.0
    %331 = vmatpush1.msra.mxu0 0.0
    %332 = vmatprep.subr.mxu0 0.0
    %333 = vmatpush1.msra.mxu0 0.0
    %334 = vmatprep.subr.mxu0 0.0
    %335 = vmatpush1.msra.mxu0 0.0
    %336 = vmatprep.subr.mxu0 0.0
    %337 = vmatpush1.msra.mxu0 0.0
    %338 = vmatprep.subr.mxu0 0.0
    %339 = vmatpush1.msra.mxu0 0.0
    %340 = vmatprep.subr.mxu0 0.0
    %341 = vmatpush1.msra.mxu0 0.0
    %342 = vmatprep.subr.mxu0 0.0
    %343 = vmatpush1.msra.mxu0 0.0
    %344 = vmatprep.subr.mxu0 0.0
    %345 = vmatpush1.msra.mxu0 0.0
    %346 = vmatprep.subr.mxu0 0.0
    %347 = vmatpush1.msra.mxu0 0.0
    %348 = vmatprep.subr.mxu0 0.0
    %349 = vmatpush1.msra.mxu0 0.0
    %350 = vmatprep.subr.mxu0 0.0
    %351 = vmatpush1.msra.mxu0 0.0
    %352 = vmatprep.subr.mxu0 0.0
    %353 = vmatpush1.msra.mxu0 0.0
    %354 = vmatprep.subr.mxu0 0.0
    %355 = vmatpush1.msra.mxu0 0.0
    %356 = vmatprep.subr.mxu0 0.0
    %357 = vmatpush1.msra.mxu0 0.0
    %358 = vmatprep.subr.mxu0 0.0
    %359 = vmatpush1.msra.mxu0 0.0
    %360 = vmatprep.subr.mxu0 0.0
    %361 = vmatpush1.msra.mxu0 0.0
    %362 = vmatprep.subr.mxu0 0.0
    %363 = vmatpush1.msra.mxu0 0.0
    %364 = vmatprep.subr.mxu0 0.0
    %365 = vmatpush1.msra.mxu0 0.0
    %366 = vmatprep.subr.mxu0 0.0
    %367 = vmatpush1.msra.mxu0 0.0
    %368 = vmatprep.subr.mxu0 0.0
    %369 = vmatpush1.msra.mxu0 0.0
    %370 = vmatprep.subr.mxu0 0.0
    %371 = vmatpush1.msra.mxu0 0.0
    %372 = vmatprep.subr.mxu0 0.0
    %373 = vmatpush1.msra.mxu0 0.0
    %374 = vmatprep.subr.mxu0 0.0
    %375 = vmatpush1.msra.mxu0 0.0
    %376 = vmatprep.subr.mxu0 0.0
    %377 = vmatpush1.msra.mxu0 0.0
    %378 = vmatprep.subr.mxu0 0.0
    %379 = vmatpush1.msra.mxu0 0.0
    %380 = vmatprep.subr.mxu0 0.0
    %381 = vmatpush1.msra.mxu0 0.0
    %382 = vmatprep.subr.mxu0 0.0
    %383 = vmatpush1.msra.mxu0 0.0
    %384 = vmatprep.mubr.f32.mxu0 0.0
    %385 = vmatmul.mubr.f32.gmra.mrb[0].mxu0 %v318
    %v386 = vpop.f32.mrb[0].mxu0
    %v387 = vadd.f32 0.0, %v386
    %v388 = vpop.f32.mrb[0].mxu0
    %389 = vdwg.mxu0
    %v391 = vrot.slane %v387, 7
    %v394 = vadd.f32 %v161, %v391
    %v395 = vadd.f32 %v166, %v387
    %v396 = vxor.u32 %v394, 2147483648
    %v397 = vxor.u32 %v395, 2147483648
    %v398 = vmul.f32 %v396, 1.442695
    %v399 = vpow.pop %v398
    %v400 = vmul.f32 %v397, 1.442695
    %v401 = vpow.pop %v400
    %v402 = vadd.f32 %v399, 1.0
    %v403 = vadd.f32 %v401, 1.0
    %v404 = vrcp.pop %v402
    %v405 = vmul.f32 1.0, %v404
    %v406 = vrcp.pop %v403
    %v407 = vmul.f32 1.0, %v406
    %v408 = vtanh.pop %v394
    %v409 = vtanh.pop %v395
    %v412 = vrot.slane %v296, 7
    %v413 = vrot.slane %v297, 7
    %414 = vrot.lane.b32.xlu0 %v412, 32
    %v415 = vpop.permute.xlu0 %414
    %416 = vrot.lane.b32.xlu0 %v413, 32
    %v417 = vpop.permute.xlu0 %416
    %v420 = vmul.f32 %v405, %v415
    %v421 = vmul.f32 %v407, %v417
    %424 = vrot.lane.b32.xlu0 %v408, 64
    %v425 = vpop.permute.xlu0 %424
    %426 = vrot.lane.b32.xlu0 %v409, 64
    %v427 = vpop.permute.xlu0 %426
    %v430 = vmul.f32 %v405, %v425
    %v431 = vmul.f32 %v407, %v427
    %434 = vrot.lane.b32.xlu0 %v430, 32
    %v435 = vpop.permute.xlu0 %434
    %436 = vrot.lane.b32.xlu0 %v431, 32
    %v437 = vpop.permute.xlu0 %436
    %v440 = vadd.f32 %v420, %v435
    %v441 = vadd.f32 %v421, %v437
    %v442 = vtanh.pop %v440
    %v443 = vtanh.pop %v441
    %446 = vrot.lane.b32.xlu0 %v442, 64
    %v447 = vpop.permute.xlu0 %446
    %448 = vrot.lane.b32.xlu0 %v443, 64
    %v449 = vpop.permute.xlu0 %448
    %v452 = vmul.f32 %v405, %v447
    %v453 = vmul.f32 %v407, %v449
    %v456 = vrot.slane %v452, 1
    %v457 = vsel %vm313, %v453, %v456
    %458 = vrot.lane.b32.xlu0 %v457, 32
    %v459 = vpop.permute.xlu0 %458
    %v460 = vsel %vm317, %v459, 0
    %462 = vmatprep.subr.mxu0 0.0
    %463 = vmatpush1.msra.mxu0 %v270
    %464 = vmatprep.subr.mxu0 0.0
    %465 = vmatpush1.msra.mxu0 %v271
    %466 = vmatprep.subr.mxu0 0.0
    %467 = vmatpush1.msra.mxu0 %v272
    %468 = vmatprep.subr.mxu0 0.0
    %469 = vmatpush1.msra.mxu0 %v273
    %470 = vmatprep.subr.mxu0 0.0
    %471 = vmatpush1.msra.mxu0 0.0
    %472 = vmatprep.subr.mxu0 0.0
    %473 = vmatpush1.msra.mxu0 0.0
    %474 = vmatprep.subr.mxu0 0.0
    %475 = vmatpush1.msra.mxu0 0.0
    %476 = vmatprep.subr.mxu0 0.0
    %477 = vmatpush1.msra.mxu0 0.0
    %478 = vmatprep.subr.mxu0 0.0
    %479 = vmatpush1.msra.mxu0 0.0
    %480 = vmatprep.subr.mxu0 0.0
    %481 = vmatpush1.msra.mxu0 0.0
    %482 = vmatprep.subr.mxu0 0.0
    %483 = vmatpush1.msra.mxu0 0.0
    %484 = vmatprep.subr.mxu0 0.0
    %485 = vmatpush1.msra.mxu0 0.0
    %486 = vmatprep.subr.mxu0 0.0
    %487 = vmatpush1.msra.mxu0 0.0
    %488 = vmatprep.subr.mxu0 0.0
    %489 = vmatpush1.msra.mxu0 0.0
    %490 = vmatprep.subr.mxu0 0.0
    %491 = vmatpush1.msra.mxu0 0.0
    %492 = vmatprep.subr.mxu0 0.0
    %493 = vmatpush1.msra.mxu0 0.0
    %494 = vmatprep.subr.mxu0 0.0
    %495 = vmatpush1.msra.mxu0 0.0
    %496 = vmatprep.subr.mxu0 0.0
    %497 = vmatpush1.msra.mxu0 0.0
    %498 = vmatprep.subr.mxu0 0.0
    %499 = vmatpush1.msra.mxu0 0.0
    %500 = vmatprep.subr.mxu0 0.0
    %501 = vmatpush1.msra.mxu0 0.0
    %502 = vmatprep.subr.mxu0 0.0
    %503 = vmatpush1.msra.mxu0 0.0
    %504 = vmatprep.subr.mxu0 0.0
    %505 = vmatpush1.msra.mxu0 0.0
    %506 = vmatprep.subr.mxu0 0.0
    %507 = vmatpush1.msra.mxu0 0.0
    %508 = vmatprep.subr.mxu0 0.0
    %509 = vmatpush1.msra.mxu0 0.0
    %510 = vmatprep.subr.mxu0 0.0
    %511 = vmatpush1.msra.mxu0 0.0
    %512 = vmatprep.subr.mxu0 0.0
    %513 = vmatpush1.msra.mxu0 0.0
    %514 = vmatprep.subr.mxu0 0.0
    %515 = vmatpush1.msra.mxu0 0.0
    %516 = vmatprep.subr.mxu0 0.0
    %517 = vmatpush1.msra.mxu0 0.0
    %518 = vmatprep.subr.mxu0 0.0
    %519 = vmatpush1.msra.mxu0 0.0
    %520 = vmatprep.subr.mxu0 0.0
    %521 = vmatpush1.msra.mxu0 0.0
    %522 = vmatprep.subr.mxu0 0.0
    %523 = vmatpush1.msra.mxu0 0.0
    %524 = vmatprep.subr.mxu0 0.0
    %525 = vmatpush1.msra.mxu0 0.0
    %526 = vmatprep.mubr.f32.mxu0 0.0
    %527 = vmatmul.mubr.f32.gmra.mrb[0].mxu0 %v460
    %v528 = vpop.f32.mrb[0].mxu0
    %v529 = vadd.f32 0.0, %v528
    %v530 = vpop.f32.mrb[0].mxu0
    %531 = vdwg.mxu0
    %v533 = vrot.slane %v529, 6
    %v534 = vrot.slane %v529, 7
    %v537 = vadd.f32 %v161, %v533
    %v538 = vadd.f32 %v166, %v534
    %v539 = vxor.u32 %v537, 2147483648
    %v540 = vxor.u32 %v538, 2147483648
    %v541 = vmul.f32 %v539, 1.442695
    %v542 = vpow.pop %v541
    %v543 = vmul.f32 %v540, 1.442695
    %v544 = vpow.pop %v543
    %v545 = vadd.f32 %v542, 1.0
    %v546 = vadd.f32 %v544, 1.0
    %v547 = vrcp.pop %v545
    %v548 = vmul.f32 1.0, %v547
    %v549 = vrcp.pop %v546
    %v550 = vmul.f32 1.0, %v549
    %v551 = vtanh.pop %v537
    %v552 = vtanh.pop %v538
    %v555 = vrot.slane %v440, 7
    %v556 = vrot.slane %v441, 7
    %v559 = vmul.f32 %v548, %v555
    %v560 = vmul.f32 %v550, %v556
    %563 = vrot.lane.b32.xlu0 %v551, 64
    %v564 = vpop.permute.xlu0 %563
    %565 = vrot.lane.b32.xlu0 %v552, 64
    %v566 = vpop.permute.xlu0 %565
    %v569 = vmul.f32 %v548, %v564
    %v570 = vmul.f32 %v550, %v566
    %573 = vrot.lane.b32.xlu0 %v569, 32
    %v574 = vpop.permute.xlu0 %573
    %575 = vrot.lane.b32.xlu0 %v570, 32
    %v576 = vpop.permute.xlu0 %575
    %v579 = vadd.f32 %v559, %v574
    %v580 = vadd.f32 %v560, %v576
    %v581 = vtanh.pop %v579
    %v582 = vtanh.pop %v580
    %585 = vrot.lane.b32.xlu0 %v581, 64
    %v586 = vpop.permute.xlu0 %585
    %587 = vrot.lane.b32.xlu0 %v582, 64
    %v588 = vpop.permute.xlu0 %587
    %v591 = vmul.f32 %v548, %v586
    %v592 = vmul.f32 %v550, %v588
    %v595 = vrot.slane %v591, 2
    %v596 = vrot.slane %v592, 1
    %v597 = vsel %vm313, %v596, %v595
    %598 = vrot.lane.b32.xlu0 %v597, 32
    %v599 = vpop.permute.xlu0 %598
    %v600 = vsel %vm317, %v599, 0
    %602 = vmatprep.subr.mxu0 0.0
    %603 = vmatpush1.msra.mxu0 %v270
    %604 = vmatprep.subr.mxu0 0.0
    %605 = vmatpush1.msra.mxu0 %v271
    %606 = vmatprep.subr.mxu0 0.0
    %607 = vmatpush1.msra.mxu0 %v272
    %608 = vmatprep.subr.mxu0 0.0
    %609 = vmatpush1.msra.mxu0 %v273
    %610 = vmatprep.subr.mxu0 0.0
    %611 = vmatpush1.msra.mxu0 0.0
    %612 = vmatprep.subr.mxu0 0.0
    %613 = vmatpush1.msra.mxu0 0.0
    %614 = vmatprep.subr.mxu0 0.0
    %615 = vmatpush1.msra.mxu0 0.0
    %616 = vmatprep.subr.mxu0 0.0
    %617 = vmatpush1.msra.mxu0 0.0
    %618 = vmatprep.subr.mxu0 0.0
    %619 = vmatpush1.msra.mxu0 0.0
    %620 = vmatprep.subr.mxu0 0.0
    %621 = vmatpush1.msra.mxu0 0.0
    %622 = vmatprep.subr.mxu0 0.0
    %623 = vmatpush1.msra.mxu0 0.0
    %624 = vmatprep.subr.mxu0 0.0
    %625 = vmatpush1.msra.mxu0 0.0
    %626 = vmatprep.subr.mxu0 0.0
    %627 = vmatpush1.msra.mxu0 0.0
    %628 = vmatprep.subr.mxu0 0.0
    %629 = vmatpush1.msra.mxu0 0.0
    %630 = vmatprep.subr.mxu0 0.0
    %631 = vmatpush1.msra.mxu0 0.0
    %632 = vmatprep.subr.mxu0 0.0
    %633 = vmatpush1.msra.mxu0 0.0
    %634 = vmatprep.subr.mxu0 0.0
    %635 = vmatpush1.msra.mxu0 0.0
    %636 = vmatprep.subr.mxu0 0.0
    %637 = vmatpush1.msra.mxu0 0.0
    %638 = vmatprep.subr.mxu0 0.0
    %639 = vmatpush1.msra.mxu0 0.0
    %640 = vmatprep.subr.mxu0 0.0
    %641 = vmatpush1.msra.mxu0 0.0
    %642 = vmatprep.subr.mxu0 0.0
    %643 = vmatpush1.msra.mxu0 0.0
    %644 = vmatprep.subr.mxu0 0.0
    %645 = vmatpush1.msra.mxu0 0.0
    %646 = vmatprep.subr.mxu0 0.0
    %647 = vmatpush1.msra.mxu0 0.0
    %648 = vmatprep.subr.mxu0 0.0
    %649 = vmatpush1.msra.mxu0 0.0
    %650 = vmatprep.subr.mxu0 0.0
    %651 = vmatpush1.msra.mxu0 0.0
    %652 = vmatprep.subr.mxu0 0.0
    %653 = vmatpush1.msra.mxu0 0.0
    %654 = vmatprep.subr.mxu0 0.0
    %655 = vmatpush1.msra.mxu0 0.0
    %656 = vmatprep.subr.mxu0 0.0
    %657 = vmatpush1.msra.mxu0 0.0
    %658 = vmatprep.subr.mxu0 0.0
    %659 = vmatpush1.msra.mxu0 0.0
    %660 = vmatprep.subr.mxu0 0.0
    %661 = vmatpush1.msra.mxu0 0.0
    %662 = vmatprep.subr.mxu0 0.0
    %663 = vmatpush1.msra.mxu0 0.0
    %664 = vmatprep.subr.mxu0 0.0
    %665 = vmatpush1.msra.mxu0 0.0
    %666 = vmatprep.mubr.f32.mxu0 0.0
    %667 = vmatmul.mubr.f32.gmra.mrb[0].mxu0 %v600
    %v668 = vpop.f32.mrb[0].mxu0
    %v669 = vadd.f32 0.0, %v668
    %v670 = vpop.f32.mrb[0].mxu0
    %671 = vdwg.mxu0
    %v673 = vrot.slane %v669, 5
    %v674 = vrot.slane %v669, 6
    %v677 = vadd.f32 %v161, %v673
    %v678 = vadd.f32 %v166, %v674
    %v679 = vxor.u32 %v677, 2147483648
    %v680 = vxor.u32 %v678, 2147483648
    %v681 = vmul.f32 %v679, 1.442695
    %v682 = vpow.pop %v681
    %v683 = vmul.f32 %v680, 1.442695
    %v684 = vpow.pop %v683
    %v685 = vadd.f32 %v682, 1.0
    %v686 = vadd.f32 %v684, 1.0
    %v687 = vrcp.pop %v685
    %v688 = vmul.f32 1.0, %v687
    %v689 = vrcp.pop %v686
    %v690 = vmul.f32 1.0, %v689
    %v691 = vtanh.pop %v677
    %v692 = vtanh.pop %v678
    %v695 = vrot.slane %v579, 7
    %v696 = vrot.slane %v580, 7
    %v699 = vmul.f32 %v688, %v695
    %v700 = vmul.f32 %v690, %v696
    %703 = vrot.lane.b32.xlu0 %v691, 64
    %v704 = vpop.permute.xlu0 %703
    %705 = vrot.lane.b32.xlu0 %v692, 64
    %v706 = vpop.permute.xlu0 %705
    %v709 = vmul.f32 %v688, %v704
    %v710 = vmul.f32 %v690, %v706
    %713 = vrot.lane.b32.xlu0 %v709, 32
    %v714 = vpop.permute.xlu0 %713
    %715 = vrot.lane.b32.xlu0 %v710, 32
    %v716 = vpop.permute.xlu0 %715
    %v719 = vadd.f32 %v699, %v714
    %v720 = vadd.f32 %v700, %v716
    %v721 = vtanh.pop %v719
    %v722 = vtanh.pop %v720
    %725 = vrot.lane.b32.xlu0 %v721, 64
    %v726 = vpop.permute.xlu0 %725
    %727 = vrot.lane.b32.xlu0 %v722, 64
    %v728 = vpop.permute.xlu0 %727
    %v731 = vmul.f32 %v688, %v726
    %v732 = vmul.f32 %v690, %v728
    %v735 = vrot.slane %v731, 3
    %v736 = vrot.slane %v732, 2
    %v737 = vsel %vm313, %v736, %v735
    %738 = vrot.lane.b32.xlu0 %v737, 32
    %v739 = vpop.permute.xlu0 %738
    %v740 = vsel %vm317, %v739, 0
    %742 = vmatprep.subr.mxu0 0.0
    %743 = vmatpush1.msra.mxu0 %v270
    %744 = vmatprep.subr.mxu0 0.0
    %745 = vmatpush1.msra.mxu0 %v271
    %746 = vmatprep.subr.mxu0 0.0
    %747 = vmatpush1.msra.mxu0 %v272
    %748 = vmatprep.subr.mxu0 0.0
    %749 = vmatpush1.msra.mxu0 %v273
    %750 = vmatprep.subr.mxu0 0.0
    %751 = vmatpush1.msra.mxu0 0.0
    %752 = vmatprep.subr.mxu0 0.0
    %753 = vmatpush1.msra.mxu0 0.0
    %754 = vmatprep.subr.mxu0 0.0
    %755 = vmatpush1.msra.mxu0 0.0
    %756 = vmatprep.subr.mxu0 0.0
    %757 = vmatpush1.msra.mxu0 0.0
    %758 = vmatprep.subr.mxu0 0.0
    %759 = vmatpush1.msra.mxu0 0.0
    %760 = vmatprep.subr.mxu0 0.0
    %761 = vmatpush1.msra.mxu0 0.0
    %762 = vmatprep.subr.mxu0 0.0
    %763 = vmatpush1.msra.mxu0 0.0
    %764 = vmatprep.subr.mxu0 0.0
    %765 = vmatpush1.msra.mxu0 0.0
    %766 = vmatprep.subr.mxu0 0.0
    %767 = vmatpush1.msra.mxu0 0.0
    %768 = vmatprep.subr.mxu0 0.0
    %769 = vmatpush1.msra.mxu0 0.0
    %770 = vmatprep.subr.mxu0 0.0
    %771 = vmatpush1.msra.mxu0 0.0
    %772 = vmatprep.subr.mxu0 0.0
    %773 = vmatpush1.msra.mxu0 0.0
    %774 = vmatprep.subr.mxu0 0.0
    %775 = vmatpush1.msra.mxu0 0.0
    %776 = vmatprep.subr.mxu0 0.0
    %777 = vmatpush1.msra.mxu0 0.0
    %778 = vmatprep.subr.mxu0 0.0
    %779 = vmatpush1.msra.mxu0 0.0
    %780 = vmatprep.subr.mxu0 0.0
    %781 = vmatpush1.msra.mxu0 0.0
    %782 = vmatprep.subr.mxu0 0.0
    %783 = vmatpush1.msra.mxu0 0.0
    %784 = vmatprep.subr.mxu0 0.0
    %785 = vmatpush1.msra.mxu0 0.0
    %786 = vmatprep.subr.mxu0 0.0
    %787 = vmatpush1.msra.mxu0 0.0
    %788 = vmatprep.subr.mxu0 0.0
    %789 = vmatpush1.msra.mxu0 0.0
    %790 = vmatprep.subr.mxu0 0.0
    %791 = vmatpush1.msra.mxu0 0.0
    %792 = vmatprep.subr.mxu0 0.0
    %793 = vmatpush1.msra.mxu0 0.0
    %794 = vmatprep.subr.mxu0 0.0
    %795 = vmatpush1.msra.mxu0 0.0
    %796 = vmatprep.subr.mxu0 0.0
    %797 = vmatpush1.msra.mxu0 0.0
    %798 = vmatprep.subr.mxu0 0.0
    %799 = vmatpush1.msra.mxu0 0.0
    %800 = vmatprep.subr.mxu0 0.0
    %801 = vmatpush1.msra.mxu0 0.0
    %802 = vmatprep.subr.mxu0 0.0
    %803 = vmatpush1.msra.mxu0 0.0
    %804 = vmatprep.subr.mxu0 0.0
    %805 = vmatpush1.msra.mxu0 0.0
    %806 = vmatprep.mubr.f32.mxu0 0.0
    %807 = vmatmul.mubr.f32.gmra.mrb[0].mxu0 %v740
    %v808 = vpop.f32.mrb[0].mxu0
    %v809 = vadd.f32 0.0, %v808
    %v810 = vpop.f32.mrb[0].mxu0
    %811 = vdwg.mxu0
    %v813 = vrot.slane %v809, 4
    %v814 = vrot.slane %v809, 5
    %v817 = vadd.f32 %v161, %v813
    %v818 = vadd.f32 %v166, %v814
    %v819 = vxor.u32 %v817, 2147483648
    %v820 = vxor.u32 %v818, 2147483648
    %v821 = vmul.f32 %v819, 1.442695
    %v822 = vpow.pop %v821
    %v823 = vmul.f32 %v820, 1.442695
    %v824 = vpow.pop %v823
    %v825 = vadd.f32 %v822, 1.0
    %v826 = vadd.f32 %v824, 1.0
    %v827 = vrcp.pop %v825
    %v828 = vmul.f32 1.0, %v827
    %v829 = vrcp.pop %v826
    %v830 = vmul.f32 1.0, %v829
    %v831 = vtanh.pop %v817
    %v832 = vtanh.pop %v818
    %v835 = vrot.slane %v719, 7
    %v836 = vrot.slane %v720, 7
    %v839 = vmul.f32 %v828, %v835
    %v840 = vmul.f32 %v830, %v836
    %843 = vrot.lane.b32.xlu0 %v831, 64
    %v844 = vpop.permute.xlu0 %843
    %845 = vrot.lane.b32.xlu0 %v832, 64
    %v846 = vpop.permute.xlu0 %845
    %v849 = vmul.f32 %v828, %v844
    %v850 = vmul.f32 %v830, %v846
    %853 = vrot.lane.b32.xlu0 %v849, 32
    %v854 = vpop.permute.xlu0 %853
    %855 = vrot.lane.b32.xlu0 %v850, 32
    %v856 = vpop.permute.xlu0 %855
    %v859 = vadd.f32 %v839, %v854
    %v860 = vadd.f32 %v840, %v856
    %v861 = vtanh.pop %v859
    %v862 = vtanh.pop %v860
    %865 = vrot.lane.b32.xlu0 %v861, 64
    %v866 = vpop.permute.xlu0 %865
    %867 = vrot.lane.b32.xlu0 %v862, 64
    %v868 = vpop.permute.xlu0 %867
    %v871 = vmul.f32 %v828, %v866
    %v872 = vmul.f32 %v830, %v868
    %v875 = vrot.slane %v871, 4
    %v876 = vrot.slane %v872, 3
    %v877 = vsel %vm313, %v876, %v875
    %878 = vrot.lane.b32.xlu0 %v877, 32
    %v879 = vpop.permute.xlu0 %878
    %v880 = vsel %vm317, %v879, 0
    %882 = vmatprep.subr.mxu0 0.0
    %883 = vmatpush1.msra.mxu0 %v270
    %884 = vmatprep.subr.mxu0 0.0
    %885 = vmatpush1.msra.mxu0 %v271
    %886 = vmatprep.subr.mxu0 0.0
    %887 = vmatpush1.msra.mxu0 %v272
    %888 = vmatprep.subr.mxu0 0.0
    %889 = vmatpush1.msra.mxu0 %v273
    %890 = vmatprep.subr.mxu0 0.0
    %891 = vmatpush1.msra.mxu0 0.0
    %892 = vmatprep.subr.mxu0 0.0
    %893 = vmatpush1.msra.mxu0 0.0
    %894 = vmatprep.subr.mxu0 0.0
    %895 = vmatpush1.msra.mxu0 0.0
    %896 = vmatprep.subr.mxu0 0.0
    %897 = vmatpush1.msra.mxu0 0.0
    %898 = vmatprep.subr.mxu0 0.0
    %899 = vmatpush1.msra.mxu0 0.0
    %900 = vmatprep.subr.mxu0 0.0
    %901 = vmatpush1.msra.mxu0 0.0
    %902 = vmatprep.subr.mxu0 0.0
    %903 = vmatpush1.msra.mxu0 0.0
    %904 = vmatprep.subr.mxu0 0.0
    %905 = vmatpush1.msra.mxu0 0.0
    %906 = vmatprep.subr.mxu0 0.0
    %907 = vmatpush1.msra.mxu0 0.0
    %908 = vmatprep.subr.mxu0 0.0
    %909 = vmatpush1.msra.mxu0 0.0
    %910 = vmatprep.subr.mxu0 0.0
    %911 = vmatpush1.msra.mxu0 0.0
    %912 = vmatprep.subr.mxu0 0.0
    %913 = vmatpush1.msra.mxu0 0.0
    %914 = vmatprep.subr.mxu0 0.0
    %915 = vmatpush1.msra.mxu0 0.0
    %916 = vmatprep.subr.mxu0 0.0
    %917 = vmatpush1.msra.mxu0 0.0
    %918 = vmatprep.subr.mxu0 0.0
    %919 = vmatpush1.msra.mxu0 0.0
    %920 = vmatprep.subr.mxu0 0.0
    %921 = vmatpush1.msra.mxu0 0.0
    %922 = vmatprep.subr.mxu0 0.0
    %923 = vmatpush1.msra.mxu0 0.0
    %924 = vmatprep.subr.mxu0 0.0
    %925 = vmatpush1.msra.mxu0 0.0
    %926 = vmatprep.subr.mxu0 0.0
    %927 = vmatpush1.msra.mxu0 0.0
    %928 = vmatprep.subr.mxu0 0.0
    %929 = vmatpush1.msra.mxu0 0.0
    %930 = vmatprep.subr.mxu0 0.0
    %931 = vmatpush1.msra.mxu0 0.0
    %932 = vmatprep.subr.mxu0 0.0
    %933 = vmatpush1.msra.mxu0 0.0
    %934 = vmatprep.subr.mxu0 0.0
    %935 = vmatpush1.msra.mxu0 0.0
    %936 = vmatprep.subr.mxu0 0.0
    %937 = vmatpush1.msra.mxu0 0.0
    %938 = vmatprep.subr.mxu0 0.0
    %939 = vmatpush1.msra.mxu0 0.0
    %940 = vmatprep.subr.mxu0 0.0
    %941 = vmatpush1.msra.mxu0 0.0
    %942 = vmatprep.subr.mxu0 0.0
    %943 = vmatpush1.msra.mxu0 0.0
    %944 = vmatprep.subr.mxu0 0.0
    %945 = vmatpush1.msra.mxu0 0.0
    %946 = vmatprep.mubr.f32.mxu0 0.0
    %947 = vmatmul.mubr.f32.gmra.mrb[0].mxu0 %v880
    %v948 = vpop.f32.mrb[0].mxu0
    %v949 = vadd.f32 0.0, %v948
    %v950 = vpop.f32.mrb[0].mxu0
    %951 = vdwg.mxu0
    %v953 = vrot.slane %v949, 3
    %v954 = vrot.slane %v949, 4
    %v957 = vadd.f32 %v161, %v953
    %v958 = vadd.f32 %v166, %v954
    %v959 = vxor.u32 %v957, 2147483648
    %v960 = vxor.u32 %v958, 2147483648
    %v961 = vmul.f32 %v959, 1.442695
    %v962 = vpow.pop %v961
    %v963 = vmul.f32 %v960, 1.442695
    %v964 = vpow.pop %v963
    %v965 = vadd.f32 %v962, 1.0
    %v966 = vadd.f32 %v964, 1.0
    %v967 = vrcp.pop %v965
    %v968 = vmul.f32 1.0, %v967
    %v969 = vrcp.pop %v966
    %v970 = vmul.f32 1.0, %v969
    %v971 = vtanh.pop %v957
    %v972 = vtanh.pop %v958
    %v975 = vrot.slane %v859, 7
    %v976 = vrot.slane %v860, 7
    %v979 = vmul.f32 %v968, %v975
    %v980 = vmul.f32 %v970, %v976
    %983 = vrot.lane.b32.xlu0 %v971, 64
    %v984 = vpop.permute.xlu0 %983
    %985 = vrot.lane.b32.xlu0 %v972, 64
    %v986 = vpop.permute.xlu0 %985
    %v989 = vmul.f32 %v968, %v984
    %v990 = vmul.f32 %v970, %v986
    %993 = vrot.lane.b32.xlu0 %v989, 32
    %v994 = vpop.permute.xlu0 %993
    %995 = vrot.lane.b32.xlu0 %v990, 32
    %v996 = vpop.permute.xlu0 %995
    %v999 = vadd.f32 %v979, %v994
    %v1000 = vadd.f32 %v980, %v996
    %v1001 = vtanh.pop %v999
    %v1002 = vtanh.pop %v1000
    %1005 = vrot.lane.b32.xlu0 %v1001, 64
    %v1006 = vpop.permute.xlu0 %1005
    %1007 = vrot.lane.b32.xlu0 %v1002, 64
    %v1008 = vpop.permute.xlu0 %1007
    %v1011 = vmul.f32 %v968, %v1006
    %v1012 = vmul.f32 %v970, %v1008
    %v1015 = vrot.slane %v1011, 5
    %v1016 = vrot.slane %v1012, 4
    %v1017 = vsel %vm313, %v1016, %v1015
    %1018 = vrot.lane.b32.xlu0 %v1017, 32
    %v1019 = vpop.permute.xlu0 %1018
    %v1020 = vsel %vm317, %v1019, 0
    %1022 = vmatprep.subr.mxu0 0.0
    %1023 = vmatpush1.msra.mxu0 %v270
    %1024 = vmatprep.subr.mxu0 0.0
    %1025 = vmatpush1.msra.mxu0 %v271
    %1026 = vmatprep.subr.mxu0 0.0
    %1027 = vmatpush1.msra.mxu0 %v272
    %1028 = vmatprep.subr.mxu0 0.0
    %1029 = vmatpush1.msra.mxu0 %v273
    %1030 = vmatprep.subr.mxu0 0.0
    %1031 = vmatpush1.msra.mxu0 0.0
    %1032 = vmatprep.subr.mxu0 0.0
    %1033 = vmatpush1.msra.mxu0 0.0
    %1034 = vmatprep.subr.mxu0 0.0
    %1035 = vmatpush1.msra.mxu0 0.0
    %1036 = vmatprep.subr.mxu0 0.0
    %1037 = vmatpush1.msra.mxu0 0.0
    %1038 = vmatprep.subr.mxu0 0.0
    %1039 = vmatpush1.msra.mxu0 0.0
    %1040 = vmatprep.subr.mxu0 0.0
    %1041 = vmatpush1.msra.mxu0 0.0
    %1042 = vmatprep.subr.mxu0 0.0
    %1043 = vmatpush1.msra.mxu0 0.0
    %1044 = vmatprep.subr.mxu0 0.0
    %1045 = vmatpush1.msra.mxu0 0.0
    %1046 = vmatprep.subr.mxu0 0.0
    %1047 = vmatpush1.msra.mxu0 0.0
    %1048 = vmatprep.subr.mxu0 0.0
    %1049 = vmatpush1.msra.mxu0 0.0
    %1050 = vmatprep.subr.mxu0 0.0
    %1051 = vmatpush1.msra.mxu0 0.0
    %1052 = vmatprep.subr.mxu0 0.0
    %1053 = vmatpush1.msra.mxu0 0.0
    %1054 = vmatprep.subr.mxu0 0.0
    %1055 = vmatpush1.msra.mxu0 0.0
    %1056 = vmatprep.subr.mxu0 0.0
    %1057 = vmatpush1.msra.mxu0 0.0
    %1058 = vmatprep.subr.mxu0 0.0
    %1059 = vmatpush1.msra.mxu0 0.0
    %1060 = vmatprep.subr.mxu0 0.0
    %1061 = vmatpush1.msra.mxu0 0.0
    %1062 = vmatprep.subr.mxu0 0.0
    %1063 = vmatpush1.msra.mxu0 0.0
    %1064 = vmatprep.subr.mxu0 0.0
    %1065 = vmatpush1.msra.mxu0 0.0
    %1066 = vmatprep.subr.mxu0 0.0
    %1067 = vmatpush1.msra.mxu0 0.0
    %1068 = vmatprep.subr.mxu0 0.0
    %1069 = vmatpush1.msra.mxu0 0.0
    %1070 = vmatprep.subr.mxu0 0.0
    %1071 = vmatpush1.msra.mxu0 0.0
    %1072 = vmatprep.subr.mxu0 0.0
    %1073 = vmatpush1.msra.mxu0 0.0
    %1074 = vmatprep.subr.mxu0 0.0
    %1075 = vmatpush1.msra.mxu0 0.0
    %1076 = vmatprep.subr.mxu0 0.0
    %1077 = vmatpush1.msra.mxu0 0.0
    %1078 = vmatprep.subr.mxu0 0.0
    %1079 = vmatpush1.msra.mxu0 0.0
    %1080 = vmatprep.subr.mxu0 0.0
    %1081 = vmatpush1.msra.mxu0 0.0
    %1082 = vmatprep.subr.mxu0 0.0
    %1083 = vmatpush1.msra.mxu0 0.0
    %1084 = vmatprep.subr.mxu0 0.0
    %1085 = vmatpush1.msra.mxu0 0.0
    %1086 = vmatprep.mubr.f32.mxu0 0.0
    %1087 = vmatmul.mubr.f32.gmra.mrb[0].mxu0 %v1020
    %v1088 = vpop.f32.mrb[0].mxu0
    %v1089 = vadd.f32 0.0, %v1088
    %v1090 = vpop.f32.mrb[0].mxu0
    %1091 = vdwg.mxu0
    %v1093 = vrot.slane %v1089, 2
    %v1094 = vrot.slane %v1089, 3
    %v1097 = vadd.f32 %v161, %v1093
    %v1098 = vadd.f32 %v166, %v1094
    %v1099 = vxor.u32 %v1097, 2147483648
    %v1100 = vxor.u32 %v1098, 2147483648
    %v1101 = vmul.f32 %v1099, 1.442695
    %v1102 = vpow.pop %v1101
    %v1103 = vmul.f32 %v1100, 1.442695
    %v1104 = vpow.pop %v1103
    %v1105 = vadd.f32 %v1102, 1.0
    %v1106 = vadd.f32 %v1104, 1.0
    %v1107 = vrcp.pop %v1105
    %v1108 = vmul.f32 1.0, %v1107
    %v1109 = vrcp.pop %v1106
    %v1110 = vmul.f32 1.0, %v1109
    %v1111 = vtanh.pop %v1097
    %v1112 = vtanh.pop %v1098
    %v1115 = vrot.slane %v999, 7
    %v1116 = vrot.slane %v1000, 7
    %v1119 = vmul.f32 %v1108, %v1115
    %v1120 = vmul.f32 %v1110, %v1116
    %1123 = vrot.lane.b32.xlu0 %v1111, 64
    %v1124 = vpop.permute.xlu0 %1123
    %1125 = vrot.lane.b32.xlu0 %v1112, 64
    %v1126 = vpop.permute.xlu0 %1125
    %v1129 = vmul.f32 %v1108, %v1124
    %v1130 = vmul.f32 %v1110, %v1126
    %1133 = vrot.lane.b32.xlu0 %v1129, 32
    %v1134 = vpop.permute.xlu0 %1133
    %1135 = vrot.lane.b32.xlu0 %v1130, 32
    %v1136 = vpop.permute.xlu0 %1135
    %v1139 = vadd.f32 %v1119, %v1134
    %v1140 = vadd.f32 %v1120, %v1136
    %v1141 = vtanh.pop %v1139
    %v1142 = vtanh.pop %v1140
    %1145 = vrot.lane.b32.xlu0 %v1141, 64
    %v1146 = vpop.permute.xlu0 %1145
    %1147 = vrot.lane.b32.xlu0 %v1142, 64
    %v1148 = vpop.permute.xlu0 %1147
    %v1151 = vmul.f32 %v1108, %v1146
    %v1152 = vmul.f32 %v1110, %v1148
    %v1155 = vrot.slane %v1151, 6
    %v1156 = vrot.slane %v1152, 5
    %v1157 = vsel %vm313, %v1156, %v1155
    %1158 = vrot.lane.b32.xlu0 %v1157, 32
    %v1159 = vpop.permute.xlu0 %1158
    %v1160 = vsel %vm317, %v1159, 0
    %1162 = vmatprep.subr.mxu0 0.0
    %1163 = vmatpush1.msra.mxu0 %v270
    %1164 = vmatprep.subr.mxu0 0.0
    %1165 = vmatpush1.msra.mxu0 %v271
    %1166 = vmatprep.subr.mxu0 0.0
    %1167 = vmatpush1.msra.mxu0 %v272
    %1168 = vmatprep.subr.mxu0 0.0
    %1169 = vmatpush1.msra.mxu0 %v273
    %1170 = vmatprep.subr.mxu0 0.0
    %1171 = vmatpush1.msra.mxu0 0.0
    %1172 = vmatprep.subr.mxu0 0.0
    %1173 = vmatpush1.msra.mxu0 0.0
    %1174 = vmatprep.subr.mxu0 0.0
    %1175 = vmatpush1.msra.mxu0 0.0
    %1176 = vmatprep.subr.mxu0 0.0
    %1177 = vmatpush1.msra.mxu0 0.0
    %1178 = vmatprep.subr.mxu0 0.0
    %1179 = vmatpush1.msra.mxu0 0.0
    %1180 = vmatprep.subr.mxu0 0.0
    %1181 = vmatpush1.msra.mxu0 0.0
    %1182 = vmatprep.subr.mxu0 0.0
    %1183 = vmatpush1.msra.mxu0 0.0
    %1184 = vmatprep.subr.mxu0 0.0
    %1185 = vmatpush1.msra.mxu0 0.0
    %1186 = vmatprep.subr.mxu0 0.0
    %1187 = vmatpush1.msra.mxu0 0.0
    %1188 = vmatprep.subr.mxu0 0.0
    %1189 = vmatpush1.msra.mxu0 0.0
    %1190 = vmatprep.subr.mxu0 0.0
    %1191 = vmatpush1.msra.mxu0 0.0
    %1192 = vmatprep.subr.mxu0 0.0
    %1193 = vmatpush1.msra.mxu0 0.0
    %1194 = vmatprep.subr.mxu0 0.0
    %1195 = vmatpush1.msra.mxu0 0.0
    %1196 = vmatprep.subr.mxu0 0.0
    %1197 = vmatpush1.msra.mxu0 0.0
    %1198 = vmatprep.subr.mxu0 0.0
    %1199 = vmatpush1.msra.mxu0 0.0
    %1200 = vmatprep.subr.mxu0 0.0
    %1201 = vmatpush1.msra.mxu0 0.0
    %1202 = vmatprep.subr.mxu0 0.0
    %1203 = vmatpush1.msra.mxu0 0.0
    %1204 = vmatprep.subr.mxu0 0.0
    %1205 = vmatpush1.msra.mxu0 0.0
    %1206 = vmatprep.subr.mxu0 0.0
    %1207 = vmatpush1.msra.mxu0 0.0
    %1208 = vmatprep.subr.mxu0 0.0
    %1209 = vmatpush1.msra.mxu0 0.0
    %1210 = vmatprep.subr.mxu0 0.0
    %1211 = vmatpush1.msra.mxu0 0.0
    %1212 = vmatprep.subr.mxu0 0.0
    %1213 = vmatpush1.msra.mxu0 0.0
    %1214 = vmatprep.subr.mxu0 0.0
    %1215 = vmatpush1.msra.mxu0 0.0
    %1216 = vmatprep.subr.mxu0 0.0
    %1217 = vmatpush1.msra.mxu0 0.0
    %1218 = vmatprep.subr.mxu0 0.0
    %1219 = vmatpush1.msra.mxu0 0.0
    %1220 = vmatprep.subr.mxu0 0.0
    %1221 = vmatpush1.msra.mxu0 0.0
    %1222 = vmatprep.subr.mxu0 0.0
    %1223 = vmatpush1.msra.mxu0 0.0
    %1224 = vmatprep.subr.mxu0 0.0
    %1225 = vmatpush1.msra.mxu0 0.0
    %1226 = vmatprep.mubr.f32.mxu0 0.0
    %1227 = vmatmul.mubr.f32.gmra.mrb[0].mxu0 %v1160
    %v1228 = vpop.f32.mrb[0].mxu0
    %v1229 = vadd.f32 0.0, %v1228
    %v1230 = vpop.f32.mrb[0].mxu0
    %1231 = vdwg.mxu0
    %v1233 = vrot.slane %v1229, 1
    %v1234 = vrot.slane %v1229, 2
    %v1237 = vadd.f32 %v161, %v1233
    %v1238 = vadd.f32 %v166, %v1234
    %v1239 = vxor.u32 %v1237, 2147483648
    %v1240 = vxor.u32 %v1238, 2147483648
    %v1241 = vmul.f32 %v1239, 1.442695
    %v1242 = vpow.pop %v1241
    %v1243 = vmul.f32 %v1240, 1.442695
    %v1244 = vpow.pop %v1243
    %v1245 = vadd.f32 %v1242, 1.0
    %v1246 = vadd.f32 %v1244, 1.0
    %v1247 = vrcp.pop %v1245
    %v1248 = vmul.f32 1.0, %v1247
    %v1249 = vrcp.pop %v1246
    %v1250 = vmul.f32 1.0, %v1249
    %v1251 = vtanh.pop %v1237
    %v1252 = vtanh.pop %v1238
    %v1255 = vrot.slane %v1139, 7
    %v1256 = vrot.slane %v1140, 7
    %v1259 = vmul.f32 %v1248, %v1255
    %v1260 = vmul.f32 %v1250, %v1256
    %1263 = vrot.lane.b32.xlu0 %v1251, 64
    %v1264 = vpop.permute.xlu0 %1263
    %1265 = vrot.lane.b32.xlu0 %v1252, 64
    %v1266 = vpop.permute.xlu0 %1265
    %v1269 = vmul.f32 %v1248, %v1264
    %v1270 = vmul.f32 %v1250, %v1266
    %1273 = vrot.lane.b32.xlu0 %v1269, 32
    %v1274 = vpop.permute.xlu0 %1273
    %1275 = vrot.lane.b32.xlu0 %v1270, 32
    %v1276 = vpop.permute.xlu0 %1275
    %v1279 = vadd.f32 %v1259, %v1274
    %v1280 = vadd.f32 %v1260, %v1276
    %v1281 = vtanh.pop %v1279
    %v1282 = vtanh.pop %v1280
    %1285 = vrot.lane.b32.xlu0 %v1281, 64
    %v1286 = vpop.permute.xlu0 %1285
    %1287 = vrot.lane.b32.xlu0 %v1282, 64
    %v1288 = vpop.permute.xlu0 %1287
    %v1291 = vmul.f32 %v1248, %v1286
    %v1292 = vmul.f32 %v1250, %v1288
    %v1293 = vld [vmem:[%s8] sm:$0xff]
    %v1294 = vld [vmem:[%s8 + $0x8] sm:$0xff]
    %v1295 = vld [vmem:[%s8 + $0x10] sm:$0xff]
    %v1296 = vld [vmem:[%s8 + $0x18] sm:$0xff]
    %v1297 = vld [vmem:[%s8 + $0x20] sm:$0xff]
    %v1298 = vld [vmem:[%s8 + $0x28] sm:$0xff]
    %v1299 = vld [vmem:[%s8 + $0x30] sm:$0xff]
    %v1300 = vld [vmem:[%s8 + $0x38] sm:$0xff]
    %1302 = vrot.lane.b32.xlu0 %v269, 32
    %v1303 = vpop.permute.xlu0 %1302
    %v1304 = vsel %vm317, %v1303, 0
    %1306 = vmatprep.subr.mxu0 0.0
    %1307 = vmatpush1.msra.mxu0 %v1297
    %1308 = vmatprep.subr.mxu0 0.0
    %1309 = vmatpush1.msra.mxu0 %v1298
    %1310 = vmatprep.subr.mxu0 0.0
    %1311 = vmatpush1.msra.mxu0 %v1299
    %1312 = vmatprep.subr.mxu0 0.0
    %1313 = vmatpush1.msra.mxu0 %v1300
    %1314 = vmatprep.subr.mxu0 0.0
    %1315 = vmatpush1.msra.mxu0 0.0
    %1316 = vmatprep.subr.mxu0 0.0
    %1317 = vmatpush1.msra.mxu0 0.0
    %1318 = vmatprep.subr.mxu0 0.0
    %1319 = vmatpush1.msra.mxu0 0.0
    %1320 = vmatprep.subr.mxu0 0.0
    %1321 = vmatpush1.msra.mxu0 0.0
    %1322 = vmatprep.subr.mxu0 0.0
    %1323 = vmatpush1.msra.mxu0 0.0
    %1324 = vmatprep.subr.mxu0 0.0
    %1325 = vmatpush1.msra.mxu0 0.0
    %1326 = vmatprep.subr.mxu0 0.0
    %1327 = vmatpush1.msra.mxu0 0.0
    %1328 = vmatprep.subr.mxu0 0.0
    %1329 = vmatpush1.msra.mxu0 0.0
    %1330 = vmatprep.subr.mxu0 0.0
    %1331 = vmatpush1.msra.mxu0 0.0
    %1332 = vmatprep.subr.mxu0 0.0
    %1333 = vmatpush1.msra.mxu0 0.0
    %1334 = vmatprep.subr.mxu0 0.0
    %1335 = vmatpush1.msra.mxu0 0.0
    %1336 = vmatprep.subr.mxu0 0.0
    %1337 = vmatpush1.msra.mxu0 0.0
    %1338 = vmatprep.subr.mxu0 0.0
    %1339 = vmatpush1.msra.mxu0 0.0
    %1340 = vmatprep.subr.mxu0 0.0
    %1341 = vmatpush1.msra.mxu0 0.0
    %1342 = vmatprep.subr.mxu0 0.0
    %1343 = vmatpush1.msra.mxu0 0.0
    %1344 = vmatprep.subr.mxu0 0.0
    %1345 = vmatpush1.msra.mxu0 0.0
    %1346 = vmatprep.subr.mxu0 0.0
    %1347 = vmatpush1.msra.mxu0 0.0
    %1348 = vmatprep.subr.mxu0 0.0
    %1349 = vmatpush1.msra.mxu0 0.0
    %1350 = vmatprep.subr.mxu0 0.0
    %1351 = vmatpush1.msra.mxu0 0.0
    %1352 = vmatprep.subr.mxu0 0.0
    %1353 = vmatpush1.msra.mxu0 0.0
    %1354 = vmatprep.subr.mxu0 0.0
    %1355 = vmatpush1.msra.mxu0 0.0
    %1356 = vmatprep.subr.mxu0 0.0
    %1357 = vmatpush1.msra.mxu0 0.0
    %1358 = vmatprep.subr.mxu0 0.0
    %1359 = vmatpush1.msra.mxu0 0.0
    %1360 = vmatprep.subr.mxu0 0.0
    %1361 = vmatpush1.msra.mxu0 0.0
    %1362 = vmatprep.subr.mxu0 0.0
    %1363 = vmatpush1.msra.mxu0 0.0
    %1364 = vmatprep.subr.mxu0 0.0
    %1365 = vmatpush1.msra.mxu0 0.0
    %1366 = vmatprep.subr.mxu0 0.0
    %1367 = vmatpush1.msra.mxu0 0.0
    %1368 = vmatprep.subr.mxu0 0.0
    %1369 = vmatpush1.msra.mxu0 0.0
    %1370 = vmatprep.mubr.f32.mxu0 0.0
    %1371 = vmatmul.mubr.f32.gmra.mrb[0].mxu0 %v1304
    %v1372 = vpop.f32.mrb[0].mxu0
    %v1373 = vadd.f32 0.0, %v1372
    %v1374 = vpop.f32.mrb[0].mxu0
    %1375 = vdwg.mxu0
    %v1378 = vrot.slane %v1291, 7
    %v1379 = vrot.slane %v1292, 6
    %v1380 = vsel %vm313, %v1379, %v1378
    %1381 = vrot.lane.b32.xlu0 %v1380, 32
    %v1382 = vpop.permute.xlu0 %1381
    %v1383 = vsel %vm317, %v1382, 0
    %1385 = vmatprep.subr.mxu0 0.0
    %1386 = vmatpush1.msra.mxu0 %v1293
    %1387 = vmatprep.subr.mxu0 0.0
    %1388 = vmatpush1.msra.mxu0 %v1294
    %1389 = vmatprep.subr.mxu0 0.0
    %1390 = vmatpush1.msra.mxu0 %v1295
    %1391 = vmatprep.subr.mxu0 0.0
    %1392 = vmatpush1.msra.mxu0 %v1296
    %1393 = vmatprep.subr.mxu0 0.0
    %1394 = vmatpush1.msra.mxu0 0.0
    %1395 = vmatprep.subr.mxu0 0.0
    %1396 = vmatpush1.msra.mxu0 0.0
    %1397 = vmatprep.subr.mxu0 0.0
    %1398 = vmatpush1.msra.mxu0 0.0
    %1399 = vmatprep.subr.mxu0 0.0
    %1400 = vmatpush1.msra.mxu0 0.0
    %1401 = vmatprep.subr.mxu0 0.0
    %1402 = vmatpush1.msra.mxu0 0.0
    %1403 = vmatprep.subr.mxu0 0.0
    %1404 = vmatpush1.msra.mxu0 0.0
    %1405 = vmatprep.subr.mxu0 0.0
    %1406 = vmatpush1.msra.mxu0 0.0
    %1407 = vmatprep.subr.mxu0 0.0
    %1408 = vmatpush1.msra.mxu0 0.0
    %1409 = vmatprep.subr.mxu0 0.0
    %1410 = vmatpush1.msra.mxu0 0.0
    %1411 = vmatprep.subr.mxu0 0.0
    %1412 = vmatpush1.msra.mxu0 0.0
    %1413 = vmatprep.subr.mxu0 0.0
    %1414 = vmatpush1.msra.mxu0 0.0
    %1415 = vmatprep.subr.mxu0 0.0
    %1416 = vmatpush1.msra.mxu0 0.0
    %1417 = vmatprep.subr.mxu0 0.0
    %1418 = vmatpush1.msra.mxu0 0.0
    %1419 = vmatprep.subr.mxu0 0.0
    %1420 = vmatpush1.msra.mxu0 0.0
    %1421 = vmatprep.subr.mxu0 0.0
    %1422 = vmatpush1.msra.mxu0 0.0
    %1423 = vmatprep.subr.mxu0 0.0
    %1424 = vmatpush1.msra.mxu0 0.0
    %1425 = vmatprep.subr.mxu0 0.0
    %1426 = vmatpush1.msra.mxu0 0.0
    %1427 = vmatprep.subr.mxu0 0.0
    %1428 = vmatpush1.msra.mxu0 0.0
    %1429 = vmatprep.subr.mxu0 0.0
    %1430 = vmatpush1.msra.mxu0 0.0
    %1431 = vmatprep.subr.mxu0 0.0
    %1432 = vmatpush1.msra.mxu0 0.0
    %1433 = vmatprep.subr.mxu0 0.0
    %1434 = vmatpush1.msra.mxu0 0.0
    %1435 = vmatprep.subr.mxu0 0.0
    %1436 = vmatpush1.msra.mxu0 0.0
    %1437 = vmatprep.subr.mxu0 0.0
    %1438 = vmatpush1.msra.mxu0 0.0
    %1439 = vmatprep.subr.mxu0 0.0
    %1440 = vmatpush1.msra.mxu0 0.0
    %1441 = vmatprep.subr.mxu0 0.0
    %1442 = vmatpush1.msra.mxu0 0.0
    %1443 = vmatprep.subr.mxu0 0.0
    %1444 = vmatpush1.msra.mxu0 0.0
    %1445 = vmatprep.subr.mxu0 0.0
    %1446 = vmatpush1.msra.mxu0 0.0
    %1447 = vmatprep.subr.mxu0 0.0
    %1448 = vmatpush1.msra.mxu0 0.0
    %1449 = vmatprep.mubr.f32.mxu0 0.0
    %1450 = vmatmul.mubr.f32.gmra.mrb[0].mxu0 %v1383
    %v1451 = vpop.f32.mrb[0].mxu0
    %v1452 = vadd.f32 %v1373, %v1451
    %v1453 = vpop.f32.mrb[0].mxu0
    %1454 = vdwg.mxu0
    %v1455 = vld [vmem:[#allocation2] sm:$0x1]
    %v1457 = vlaneseq
    %v1458 = vshrl.u32 %v1457, 7
    %v1459 = vsub.s32 0, %v1458
    %v1460 = vrot.slane %v1455, %v1459
    %v1462 = vadd.f32 %v1452, %v1460
    %vm1463 = vcmask 1024
    %1464 = vst.msk [vmem:[%s10] sm:$0x3] %vm1463, %v1462
    // Predicated region
    $region54: #{tpu_custom_call.1} parent=1 // pred_check
      _
    $region55: #{tpu_custom_call.1} parent=1 // pred_check_branch
      %1466 = sbr.rel (0) target = $region57
    $region56: #{tpu_custom_call.1} parent=1 // pred_region
      _
    $region57: #{tpu_custom_call.1} parent=1 // pred_fallthru
      _
    // Predicated region
    $region58: #{tpu_custom_call.1} parent=1 // pred_check
      _
    $region59: #{tpu_custom_call.1} parent=1 // pred_check_branch
      %1468 = sbr.rel (0) target = $region61
    $region60: #{tpu_custom_call.1} parent=1 // pred_region
      _
    $region61: #{tpu_custom_call.1} parent=1 // pred_fallthru
      _
    %1469 = vsyncpa [#allocation4], 1
    %1470 = vsyncpa [#allocation6], 1

</llo_original>
